<compile_context>
chip_gen: v7x
topology: tpu7x:2x2x1
jax: 0.10.0
libtpu: 0.0.40
codegen_flags: <defaults>
</compile_context>

<pallas_src>
import math

import jax
import jax.numpy as jnp
from jax import lax
from jax.experimental import pallas as pl
from jax.experimental.pallas import tpu as pltpu


# ------------------------------- small helpers --------------------------------
def _pick_tile(n, prefs):
    """Largest preferred tile that evenly divides n, else the full extent."""
    for t in prefs:
        if n % t == 0:
            return t
    return n


def _head_group_width(d_model, d_k, target=512):
    """Column width of one head group: a multiple of d_k, lane-aligned (mult. of
    128) and dividing d_model; falls back to the full d_model (small models)."""
    if d_model % 128 != 0:
        return d_model
    gw = d_k
    while gw % 128 != 0:
        gw += d_k
    if d_model % gw != 0:
        return d_model
    while gw < target and d_model % (gw * 2) == 0:
        gw *= 2
    return gw


def _vmem_limit(block_bytes, scratch_bytes=0):
    """Explicit scoped-VMEM limit: double-buffered blocks + scratch + slack,
    clamped to [32 MiB, 64 MiB] (64 MiB = smallest physical VMEM, v7x)."""
    need = 2 * block_bytes + scratch_bytes + (4 << 20)
    return int(min(max(need, 32 << 20), 64 << 20))


# ------------------------------ Linear kernel ---------------------------------
def _linear_kernel(x_ref, w_ref, b_ref, o_ref):
    # x: (TM, d_in), w: (d_in, TN) pre-transposed, b: (1, TN), o: (TM, TN)
    y = jnp.dot(x_ref[...], w_ref[...], preferred_element_type=jnp.float32)
    o_ref[...] = (y + b_ref[...]).astype(o_ref.dtype)


def linear(x, w_t, b_row):
    """y = x @ w_t + b.  x: (..., d_in); w_t: (d_in, d_out) pre-transposed."""
    orig = x.shape
    d_in = orig[-1]
    d_out = w_t.shape[1]
    M = math.prod(orig[:-1])
    TM = _pick_tile(M, (256, 512, 128))
    TN = _pick_tile(d_out, (512, 256, 128))
    itemsize = max(x.dtype.itemsize, 4)
    block_bytes = (TM * d_in + d_in * TN + TN + TM * TN) * itemsize
    out = pl.pallas_call(
        _linear_kernel,
        out_shape=jax.ShapeDtypeStruct((M, d_out), x.dtype),
        # Row axis innermost: each (d_in, TN) weight tile stays VMEM-resident
        # across all row tiles and is DMA'd exactly once.
        grid=(d_out // TN, M // TM),
        in_specs=[
            pl.BlockSpec((TM, d_in), lambda n, m: (m, 0)),
            pl.BlockSpec((d_in, TN), lambda n, m: (0, n)),
            pl.BlockSpec((1, TN), lambda n, m: (0, n)),
        ],
        out_specs=pl.BlockSpec((TM, TN), lambda n, m: (m, n)),
        compiler_params=pltpu.CompilerParams(
            dimension_semantics=("parallel", "parallel"),
            vmem_limit_bytes=_vmem_limit(block_bytes)),
    )(x.reshape(M, d_in), w_t, b_row)
    return out.reshape(orig[:-1] + (d_out,))


def _fused_qkv(x2d, wqkv_t, bqkv):
    """Q/K/V projections of one shared input in a single pallas_call.
    x2d: (M, d_in), wqkv_t: (3, d_in, d_out) pre-transposed/pre-scaled,
    bqkv: (3, 1, d_out).  Returns (3, M, d_out)."""
    M, d_in = x2d.shape
    d_out = wqkv_t.shape[-1]
    TM = _pick_tile(M, (256, 512, 128))
    TN = _pick_tile(d_out, (512, 256, 128))
    itemsize = max(x2d.dtype.itemsize, 4)
    block_bytes = (TM * d_in + d_in * TN + TN + TM * TN) * itemsize
    return pl.pallas_call(
        _linear_kernel,
        out_shape=jax.ShapeDtypeStruct((3, M, d_out), x2d.dtype),
        # Row axis innermost (weight tile resident); the size-3 projection axis
        # is "arbitrary" so megacore splits on the balanced tile axes instead.
        grid=(3, d_out // TN, M // TM),
        in_specs=[
            pl.BlockSpec((TM, d_in), lambda p, n, m: (m, 0)),
            pl.BlockSpec((None, d_in, TN), lambda p, n, m: (p, 0, n)),
            pl.BlockSpec((None, 1, TN), lambda p, n, m: (p, 0, n)),
        ],
        out_specs=pl.BlockSpec((None, TM, TN), lambda p, n, m: (p, m, n)),
        compiler_params=pltpu.CompilerParams(
            dimension_semantics=("arbitrary", "parallel", "parallel"),
            vmem_limit_bytes=_vmem_limit(block_bytes)),
    )(x2d, wqkv_t, bqkv)


# ---------------- Flash-style attention (heads merged, head-group grid) --------
def _make_flash_kernel(GH, Dk, has_bias):
    def kernel(*refs):
        if has_bias:
            q_ref, k_ref, v_ref, bias_ref, o_ref, m_sc, l_sc, acc_sc = refs
        else:
            q_ref, k_ref, v_ref, o_ref, m_sc, l_sc, acc_sc = refs
            bias_ref = None

        ki = pl.program_id(3)

        @pl.when(ki == 0)
        def _():
            m_sc[...] = jnp.full(m_sc.shape, -jnp.inf, dtype=jnp.float32)
            l_sc[...] = jnp.zeros(l_sc.shape, dtype=jnp.float32)
            acc_sc[...] = jnp.zeros(acc_sc.shape, dtype=jnp.float32)

        q = q_ref[...]                           # (TQ, GW), Q pre-scaled by 1/sqrt(d_k)
        k = k_ref[...]                           # (TK, GW)
        v = v_ref[...]                           # (TK, GW), kept in the input dtype
        bias = bias_ref[...].astype(jnp.float32) if has_bias else None

        for hh in range(GH):                     # static loop over heads in this group
            lo = hh * Dk
            qh = q[:, lo:lo + Dk]
            kh = k[:, lo:lo + Dk]
            vh = v[:, lo:lo + Dk]
            # scores = qh @ kh.T as a contraction (no explicit transpose).
            s = lax.dot_general(qh, kh, (((1,), (1,)), ((), ())),
                                preferred_element_type=jnp.float32)      # (TQ, TK)
            if has_bias:
                s = s + bias

            m_prev = m_sc[hh]                                   # (TQ, 128) lane-replicated
            l_prev = l_sc[hh]
            m_cur = jnp.max(s, axis=-1, keepdims=True)          # (TQ, 1)
            m_new = jnp.maximum(m_prev, m_cur)                  # (TQ, 128)
            alpha = jnp.exp(m_prev - m_new)                     # (TQ, 128)
            m_col = m_new[:, 0:1]                               # (TQ, 1)
            a_col = alpha[:, 0:1]                               # (TQ, 1)

            p = jnp.exp(s - m_col)                              # (TQ, TK) f32
            l_new = alpha * l_prev + jnp.sum(p, axis=-1, keepdims=True)
            # PV matmul in the input dtype; accumulate in f32 via preferred type.
            pv = lax.dot_general(p.astype(v.dtype), vh, (((1,), (0,)), ((), ())),
                                 preferred_element_type=jnp.float32)     # (TQ, Dk)

            # Direct per-head stores (no concat): releases live ranges each head.
            acc_sc[:, lo:lo + Dk] = a_col * acc_sc[:, lo:lo + Dk] + pv
            m_sc[hh] = m_new
            l_sc[hh] = l_new

        @pl.when(ki == pl.num_programs(3) - 1)
        def _():
            for hh in range(GH):
                lo = hh * Dk
                l_col = l_sc[hh][:, 0:1]                        # (TQ, 1)
                inv = pl.reciprocal(l_col, approx=True)         # EUP slot, not VALU div
                inv = inv * (2.0 - l_col * inv)                 # Newton refinement
                inv = inv * (2.0 - l_col * inv)                 # -> full f32 accuracy
                acc_sc[:, lo:lo + Dk] = acc_sc[:, lo:lo + Dk] * inv
            # Single lane-dense (TQ, GW) store of this group's merged-head output.
            o_ref[...] = acc_sc[...].astype(o_ref.dtype)

    return kernel


def flash_attention(q, k, v, bias, h):
    """q: (B, Sq, h*d_k) pre-scaled, k/v: (B, Sk, h*d_k),
    bias: None or (B, 1|Sq, Sk) additive f32.
    Returns (B, Sq, h*d_k) with heads already merged (no transposes needed)."""
    B, Sq, d_model = q.shape
    Sk = k.shape[1]
    d_k = d_model // h
    GW = _head_group_width(d_model, d_k)     # head-group column width (lane aligned)
    GH = GW // d_k                           # heads per group
    G = d_model // GW                        # number of head groups
    # Conservative tiles that fit the smallest VMEM budget (v7x / v5e defaults);
    # on v6e a larger TK (512) would further cut rescale passes.
    TQ = _pick_tile(Sq, (256, 128, 512))
    TK = _pick_tile(Sk, (256, 128, 512))
    has_bias = bias is not None

    in_specs = [
        pl.BlockSpec((None, TQ, GW), lambda b, g, qi, ki: (b, qi, g)),
        pl.BlockSpec((None, TK, GW), lambda b, g, qi, ki: (b, ki, g)),
        pl.BlockSpec((None, TK, GW), lambda b, g, qi, ki: (b, ki, g)),
    ]
    inputs = [q, k, v]
    if has_bias:
        if bias.shape[1] == 1:
            in_specs.append(pl.BlockSpec((None, 1, TK), lambda b, g, qi, ki: (b, 0, ki)))
        else:
            in_specs.append(pl.BlockSpec((None, TQ, TK), lambda b, g, qi, ki: (b, qi, ki)))
        inputs.append(bias)

    itemsize = max(q.dtype.itemsize, 4)
    block_bytes = (2 * TQ * GW + 2 * TK * GW) * itemsize
    if has_bias:
        block_bytes += (TQ if bias.shape[1] != 1 else 1) * TK * 4
    scratch_bytes = (2 * GH * TQ * 128 + TQ * GW) * 4

    return pl.pallas_call(
        _make_flash_kernel(GH, d_k, has_bias),
        out_shape=jax.ShapeDtypeStruct((B, Sq, d_model), q.dtype),
        grid=(B, G, Sq // TQ, Sk // TK),                 # reduction (Sk) axis last
        in_specs=in_specs,
        out_specs=pl.BlockSpec((None, TQ, GW), lambda b, g, qi, ki: (b, qi, g)),
        scratch_shapes=[
            pltpu.VMEM((GH, TQ, 128), jnp.float32),      # running max (lane-replicated)
            pltpu.VMEM((GH, TQ, 128), jnp.float32),      # running denom (lane-replicated)
            pltpu.VMEM((TQ, GW), jnp.float32),           # output accumulator (merged heads)
        ],
        compiler_params=pltpu.CompilerParams(
            dimension_semantics=("parallel", "parallel", "parallel", "arbitrary"),
            vmem_limit_bytes=_vmem_limit(block_bytes, scratch_bytes)),
    )(*inputs)


# ------------------------------- Module forward --------------------------------
def prepare_params(params, h):
    """One-time parameter prep: transpose weights to (d_in, d_out), fold the
    1/sqrt(d_k) score scale into the Q projection, stack Q/K/V weights/biases."""
    wq, bq, wk, bk, wv, bv, wo, bo = params
    d_model = wq.shape[0]
    d_k = d_model // h
    scale = 1.0 / math.sqrt(d_k)
    wqkv_t = jnp.stack([(wq * scale).T, wk.T, wv.T])          # (3, d_in, d_model)
    bqkv = jnp.stack([bq * scale, bk, bv])[:, None, :]        # (3, 1, d_model)
    return {"wqkv_t": wqkv_t, "bqkv": bqkv, "wo_t": wo.T, "bo": bo[None, :]}


def multi_head_attention(prep, h, query, key, value, mask=None):
    """Forward pass matching the PyTorch MultiHeadAttention module (eval mode)."""
    B, Sq, d_model = query.shape
    Sk = key.shape[1]
    assert d_model % h == 0

    if (query is key) and (key is value):
        # True self-attention: one fused call, shared input read.
        qkv = _fused_qkv(query.reshape(B * Sq, d_model), prep["wqkv_t"], prep["bqkv"])
        q = qkv[0].reshape(B, Sq, d_model)
        k = qkv[1].reshape(B, Sq, d_model)
        v = qkv[2].reshape(B, Sq, d_model)
    else:
        # Cross-attention: three tiled calls (no activation-stack HBM copy).
        q = linear(query, prep["wqkv_t"][0], prep["bqkv"][0])
        k = linear(key, prep["wqkv_t"][1], prep["bqkv"][1])
        v = linear(value, prep["wqkv_t"][2], prep["bqkv"][2])

    if mask is None:
        bias = None                                      # no-bias specialized kernel
    else:
        if mask.ndim == 2:                               # (B, Sk) key-padding mask
            mask = mask[:, None, :]
        bias = jnp.where(mask == 0, jnp.float32(-1e9), jnp.float32(0.0))
        # TODO(synk): rows with every key masked degenerate to a softmax over the
        # -1e9-biased scores, exactly like masked_fill(-1e9) in the reference.

    x = flash_attention(q, k, v, bias, h)                # (B, Sq, h*d_k), heads merged
    return linear(x, prep["wo_t"], prep["bo"])


# ---------------------------------- Reference -----------------------------------
def _reference(params, h, query, key, value, mask):
    wq, bq, wk, bk, wv, bv, wo, bo = params
    B, Sq, d_model = query.shape
    Sk = key.shape[1]
    d_k = d_model // h

    def lin(x, w, b):
        return x @ w.T + b

    q = lin(query, wq, bq).reshape(B, Sq, h, d_k).transpose(0, 2, 1, 3)
    k = lin(key, wk, bk).reshape(B, Sk, h, d_k).transpose(0, 2, 1, 3)
    v = lin(value, wv, bv).reshape(B, Sk, h, d_k).transpose(0, 2, 1, 3)
    scores = jnp.einsum("bhqd,bhkd->bhqk", q, k) / math.sqrt(d_k)
    if mask is not None:
        m = mask if mask.ndim == 3 else mask[:, None, :]
        scores = jnp.where(m[:, None, :, :] == 0, -1e9, scores)
    attn = jax.nn.softmax(scores, axis=-1)
    x = jnp.einsum("bhqk,bhkd->bhqd", attn, v)
    x = x.transpose(0, 2, 1, 3).reshape(B, Sq, h * d_k)
    return lin(x, wo, bo)


# ------------------------------------- Main -------------------------------------
def _init_linear(key, d_out, d_in):
    kw, kb = jax.random.split(key)
    bound = 1.0 / math.sqrt(d_in)
    w = jax.random.uniform(kw, (d_out, d_in), jnp.float32, -bound, bound)
    b = jax.random.uniform(kb, (d_out,), jnp.float32, -bound, bound)
    return w, b


if __name__ == "__main__":
    root = jax.random.PRNGKey(0)
    keys = jax.random.split(root, 12)

    # ---- Case 1: self-attention with a key-padding mask (tiny demo shape) ----
    B, S, d_model, h = 2, 8, 32, 4
    wq, bq = _init_linear(keys[0], d_model, d_model)
    wk, bk = _init_linear(keys[1], d_model, d_model)
    wv, bv = _init_linear(keys[2], d_model, d_model)
    wo, bo = _init_linear(keys[3], d_model, d_model)
    params = (wq, bq, wk, bk, wv, bv, wo, bo)
    prep = prepare_params(params, h)

    x = jax.random.normal(keys[4], (B, S, d_model), jnp.float32)
    key_valid = jnp.array([[1] * 8, [1] * 6 + [0] * 2], jnp.float32)   # (B, Sk)
    mask = key_valid[:, None, :]                                       # (B, 1, Sk)

    self_fwd = jax.jit(lambda prm, xx, msk: multi_head_attention(prm, h, xx, xx, xx, msk))
    out1 = jax.block_until_ready(self_fwd(prep, x, mask))
    ref1 = _reference(params, h, x, x, x, mask)
    assert out1.shape == (B, S, d_model), out1.shape
    assert jnp.allclose(out1, ref1, rtol=1e-4, atol=1e-4), (
        float(jnp.max(jnp.abs(out1 - ref1))))

    # ---- Case 2: cross-attention, no mask, lane-aligned heads + tiled Sk -------
    B2, Sq2, Sk2, d2, h2 = 2, 128, 512, 256, 2          # d_k = 128 (aligned), 2 kv tiles
    wq2, bq2 = _init_linear(keys[5], d2, d2)
    wk2, bk2 = _init_linear(keys[6], d2, d2)
    wv2, bv2 = _init_linear(keys[7], d2, d2)
    wo2, bo2 = _init_linear(keys[8], d2, d2)
    params2 = (wq2, bq2, wk2, bk2, wv2, bv2, wo2, bo2)
    prep2 = prepare_params(params2, h2)

    q_in = jax.random.normal(keys[9], (B2, Sq2, d2), jnp.float32)
    k_in = jax.random.normal(keys[10], (B2, Sk2, d2), jnp.float32)
    v_in = jax.random.normal(keys[11], (B2, Sk2, d2), jnp.float32)

    cross_fwd = jax.jit(lambda prm, qq, kk, vv: multi_head_attention(prm, h2, qq, kk, vv, None))
    out2 = jax.block_until_ready(cross_fwd(prep2, q_in, k_in, v_in))
    ref2 = _reference(params2, h2, q_in, k_in, v_in, None)
    assert out2.shape == (B2, Sq2, d2), out2.shape
    assert jnp.allclose(out2, ref2, rtol=1e-4, atol=1e-4), (
        float(jnp.max(jnp.abs(out2 - ref2))))

    print("KERNEL_OK")
</pallas_src>

<mosaic_0001>
module attributes {stable_mosaic.version = 11 : i64} {
  func.func @_linear_kernel(%arg0: i32, %arg1: i32, %arg2: i32, %arg3: memref<16x32xf32, #tpu.memory_space<vmem>>, %arg4: memref<1x32x32xf32, #tpu.memory_space<vmem>>, %arg5: memref<1x1x32xf32, #tpu.memory_space<vmem>>, %arg6: memref<1x16x32xf32, #tpu.memory_space<vmem>>) attributes {dimension_semantics = [#tpu.dimension_semantics<arbitrary>, #tpu.dimension_semantics<parallel>, #tpu.dimension_semantics<parallel>], iteration_bounds = array<i64: 3, 1, 1>, scalar_prefetch = 0 : i64, scratch_operands = 0 : i64, tpu.core_type = #tpu.core_type<tc>, window_params = [{transform_indices = @transform_0, window_bounds = array<i64: 16, 32>}, {transform_indices = @transform_1, window_bounds = array<i64: 1, 32, 32>}, {transform_indices = @transform_2, window_bounds = array<i64: 1, 1, 32>}, {transform_indices = @transform_3, window_bounds = array<i64: 1, 16, 32>}]} {
    %c0 = arith.constant 0 : index
    %c0_0 = arith.constant 0 : index
    %0 = vector.load %arg3[%c0, %c0_0] : memref<16x32xf32, #tpu.memory_space<vmem>>, vector<16x32xf32>
    %c0_1 = arith.constant 0 : index
    %c0_2 = arith.constant 0 : index
    %c0_3 = arith.constant 0 : index
    %1 = vector.load %arg4[%c0_1, %c0_2, %c0_3] : memref<1x32x32xf32, #tpu.memory_space<vmem>>, vector<1x32x32xf32>
    %2 = vector.shape_cast %1 : vector<1x32x32xf32> to vector<32x32xf32>
    %cst = arith.constant dense<0.000000e+00> : vector<16x32xf32>
    %3 = tpu.matmul %0, %2, %cst {dimension_numbers = #tpu.dot_dimension_numbers<[1], [0], [0], [1], [0, 0, 1, 1], [], []>} : vector<16x32xf32>, vector<32x32xf32>, vector<16x32xf32> -> vector<16x32xf32>
    %c0_4 = arith.constant 0 : index
    %c0_5 = arith.constant 0 : index
    %c0_6 = arith.constant 0 : index
    %4 = vector.load %arg5[%c0_4, %c0_5, %c0_6] : memref<1x1x32xf32, #tpu.memory_space<vmem>>, vector<1x1x32xf32>
    %5 = vector.shape_cast %4 : vector<1x1x32xf32> to vector<1x32xf32>
    %6 = vector.broadcast %5 : vector<1x32xf32> to vector<16x32xf32>
    %7 = arith.addf %3, %6 : vector<16x32xf32>
    %c0_7 = arith.constant 0 : index
    %c0_8 = arith.constant 0 : index
    %c0_9 = arith.constant 0 : index
    %8 = vector.load %arg6[%c0_7, %c0_8, %c0_9] : memref<1x16x32xf32, #tpu.memory_space<vmem>>, vector<1x16x32xf32>
    %9 = vector.shape_cast %8 : vector<1x16x32xf32> to vector<16x32xf32>
    %10 = vector.shape_cast %7 : vector<16x32xf32> to vector<1x16x32xf32>
    tpu.vector_store %arg6[%c0_7, %c0_8, %c0_9], %10 {strides = array<i32>} : memref<1x16x32xf32, #tpu.memory_space<vmem>>, vector<1x16x32xf32>,
    return
  }
  func.func @transform_0(%arg0: i32, %arg1: i32, %arg2: i32) -> (i32, i32) {
    %c0_i32 = arith.constant 0 : i32
    %c0_i32_0 = arith.constant 0 : i32
    return %arg2, %c0_i32 : i32, i32
  }
  func.func @transform_1(%arg0: i32, %arg1: i32, %arg2: i32) -> (i32, i32, i32) {
    %c0_i32 = arith.constant 0 : i32
    %c0_i32_0 = arith.constant 0 : i32
    return %arg0, %c0_i32, %arg1 : i32, i32, i32
  }
  func.func @transform_2(%arg0: i32, %arg1: i32, %arg2: i32) -> (i32, i32, i32) {
    %c0_i32 = arith.constant 0 : i32
    %c0_i32_0 = arith.constant 0 : i32
    return %arg0, %c0_i32, %arg1 : i32, i32, i32
  }
  func.func @transform_3(%arg0: i32, %arg1: i32, %arg2: i32) -> (i32, i32, i32) {
    %c0_i32 = arith.constant 0 : i32
    return %arg0, %arg2, %arg1 : i32, i32, i32
  }
}

module attributes {stable_mosaic.version = 11 : i64} {
  func.func @kernel(%arg0: i32, %arg1: i32, %arg2: i32, %arg3: i32, %arg4: memref<1x8x32xf32, #tpu.memory_space<vmem>>, %arg5: memref<1x8x32xf32, #tpu.memory_space<vmem>>, %arg6: memref<1x8x32xf32, #tpu.memory_space<vmem>>, %arg7: memref<1x1x8xf32, #tpu.memory_space<vmem>>, %arg8: memref<1x8x32xf32, #tpu.memory_space<vmem>>, %arg9: memref<4x8x128xf32, #tpu.memory_space<vmem>>, %arg10: memref<4x8x128xf32, #tpu.memory_space<vmem>>, %arg11: memref<8x32xf32, #tpu.memory_space<vmem>>) attributes {dimension_semantics = [#tpu.dimension_semantics<parallel>, #tpu.dimension_semantics<parallel>, #tpu.dimension_semantics<parallel>, #tpu.dimension_semantics<arbitrary>], iteration_bounds = array<i64: 2, 1, 1, 1>, scalar_prefetch = 0 : i64, scratch_operands = 3 : i64, tpu.core_type = #tpu.core_type<tc>, window_params = [{transform_indices = @transform_0, window_bounds = array<i64: 1, 8, 32>}, {transform_indices = @transform_1, window_bounds = array<i64: 1, 8, 32>}, {transform_indices = @transform_2, window_bounds = array<i64: 1, 8, 32>}, {transform_indices = @transform_3, window_bounds = array<i64: 1, 1, 8>}, {transform_indices = @transform_4, window_bounds = array<i64: 1, 8, 32>}]} {
    %c0_i32 = arith.constant 0 : i32
    %0 = arith.cmpi eq, %arg3, %c0_i32 : i32
    %1 = arith.extui %0 : i1 to i32
    %c0_i32_0 = arith.constant 0 : i32
    %2 = arith.cmpi ne, %1, %c0_i32_0 : i32
    scf.if %2 {
      %cst_87 = arith.constant 0xFF800000 : f32
      %166 = vector.broadcast %cst_87 : f32 to vector<4x8x128xf32>
      %c0_88 = arith.constant 0 : index
      %c0_89 = arith.constant 0 : index
      %c0_90 = arith.constant 0 : index
      %167 = vector.load %arg9[%c0_88, %c0_89, %c0_90] : memref<4x8x128xf32, #tpu.memory_space<vmem>>, vector<4x8x128xf32>
      tpu.vector_store %arg9[%c0_88, %c0_89, %c0_90], %166 {strides = array<i32>} : memref<4x8x128xf32, #tpu.memory_space<vmem>>, vector<4x8x128xf32>,
      %cst_91 = arith.constant 0.000000e+00 : f32
      %168 = vector.broadcast %cst_91 : f32 to vector<4x8x128xf32>
      %c0_92 = arith.constant 0 : index
      %c0_93 = arith.constant 0 : index
      %c0_94 = arith.constant 0 : index
      %169 = vector.load %arg10[%c0_92, %c0_93, %c0_94] : memref<4x8x128xf32, #tpu.memory_space<vmem>>, vector<4x8x128xf32>
      tpu.vector_store %arg10[%c0_92, %c0_93, %c0_94], %168 {strides = array<i32>} : memref<4x8x128xf32, #tpu.memory_space<vmem>>, vector<4x8x128xf32>,
      %cst_95 = arith.constant 0.000000e+00 : f32
      %170 = vector.broadcast %cst_95 : f32 to vector<8x32xf32>
      %c0_96 = arith.constant 0 : index
      %c0_97 = arith.constant 0 : index
      %171 = vector.load %arg11[%c0_96, %c0_97] : memref<8x32xf32, #tpu.memory_space<vmem>>, vector<8x32xf32>
      tpu.vector_store %arg11[%c0_96, %c0_97], %170 {strides = array<i32>} : memref<8x32xf32, #tpu.memory_space<vmem>>, vector<8x32xf32>,
    } else {
    }
    %c0 = arith.constant 0 : index
    %c0_1 = arith.constant 0 : index
    %c0_2 = arith.constant 0 : index
    %3 = vector.load %arg4[%c0, %c0_1, %c0_2] : memref<1x8x32xf32, #tpu.memory_space<vmem>>, vector<1x8x32xf32>
    %4 = vector.shape_cast %3 : vector<1x8x32xf32> to vector<8x32xf32>
    %c0_3 = arith.constant 0 : index
    %c0_4 = arith.constant 0 : index
    %c0_5 = arith.constant 0 : index
    %5 = vector.load %arg5[%c0_3, %c0_4, %c0_5] : memref<1x8x32xf32, #tpu.memory_space<vmem>>, vector<1x8x32xf32>
    %6 = vector.shape_cast %5 : vector<1x8x32xf32> to vector<8x32xf32>
    %c0_6 = arith.constant 0 : index
    %c0_7 = arith.constant 0 : index
    %c0_8 = arith.constant 0 : index
    %7 = vector.load %arg6[%c0_6, %c0_7, %c0_8] : memref<1x8x32xf32, #tpu.memory_space<vmem>>, vector<1x8x32xf32>
    %8 = vector.shape_cast %7 : vector<1x8x32xf32> to vector<8x32xf32>
    %c0_9 = arith.constant 0 : index
    %c0_10 = arith.constant 0 : index
    %c0_11 = arith.constant 0 : index
    %9 = vector.load %arg7[%c0_9, %c0_10, %c0_11] : memref<1x1x8xf32, #tpu.memory_space<vmem>>, vector<1x1x8xf32>
    %10 = vector.shape_cast %9 : vector<1x1x8xf32> to vector<1x8xf32>
    %11 = vector.extract_strided_slice %4 {offsets = [0, 0], sizes = [8, 8], strides = [1, 1]} : vector<8x32xf32> to vector<8x8xf32>
    %12 = vector.extract_strided_slice %6 {offsets = [0, 0], sizes = [8, 8], strides = [1, 1]} : vector<8x32xf32> to vector<8x8xf32>
    %13 = vector.extract_strided_slice %8 {offsets = [0, 0], sizes = [8, 8], strides = [1, 1]} : vector<8x32xf32> to vector<8x8xf32>
    %cst = arith.constant dense<0.000000e+00> : vector<8x8xf32>
    %14 = tpu.matmul %11, %12, %cst {dimension_numbers = #tpu.dot_dimension_numbers<[1], [1], [0], [0], [0, 0, 1, 0], [], []>} : vector<8x8xf32>, vector<8x8xf32>, vector<8x8xf32> -> vector<8x8xf32>
    %15 = vector.broadcast %10 : vector<1x8xf32> to vector<8x8xf32>
    %16 = arith.addf %14, %15 : vector<8x8xf32>
    %c0_12 = arith.constant 0 : index
    %c0_13 = arith.constant 0 : index
    %c0_14 = arith.constant 0 : index
    %17 = vector.load %arg9[%c0_12, %c0_13, %c0_14] : memref<4x8x128xf32, #tpu.memory_space<vmem>>, vector<1x8x128xf32>
    %18 = vector.shape_cast %17 : vector<1x8x128xf32> to vector<8x128xf32>
    %c0_15 = arith.constant 0 : index
    %c0_16 = arith.constant 0 : index
    %c0_17 = arith.constant 0 : index
    %19 = vector.load %arg10[%c0_15, %c0_16, %c0_17] : memref<4x8x128xf32, #tpu.memory_space<vmem>>, vector<1x8x128xf32>
    %20 = vector.shape_cast %19 : vector<1x8x128xf32> to vector<8x128xf32>
    %cst_18 = arith.constant dense<0xFF800000> : vector<8xf32>
    %21 = vector.multi_reduction <maximumf>, %16, %cst_18 [1] : vector<8x8xf32> to vector<8xf32>
    %22 = vector.shape_cast %21 : vector<8xf32> to vector<8x1xf32>
    %23 = vector.broadcast %22 : vector<8x1xf32> to vector<8x128xf32>
    %24 = arith.maximumf %18, %23 : vector<8x128xf32>
    %25 = arith.subf %18, %24 : vector<8x128xf32>
    %26 = math.exp %25 : vector<8x128xf32>
    %27 = vector.extract_strided_slice %24 {offsets = [0, 0], sizes = [8, 1], strides = [1, 1]} : vector<8x128xf32> to vector<8x1xf32>
    %28 = vector.extract_strided_slice %26 {offsets = [0, 0], sizes = [8, 1], strides = [1, 1]} : vector<8x128xf32> to vector<8x1xf32>
    %29 = vector.broadcast %27 : vector<8x1xf32> to vector<8x8xf32>
    %30 = arith.subf %16, %29 : vector<8x8xf32>
    %31 = math.exp %30 : vector<8x8xf32>
    %32 = arith.mulf %26, %20 : vector<8x128xf32>
    %cst_19 = arith.constant dense<0.000000e+00> : vector<8xf32>
    %33 = vector.multi_reduction <add>, %31, %cst_19 [1] : vector<8x8xf32> to vector<8xf32>
    %34 = vector.shape_cast %33 : vector<8xf32> to vector<8x1xf32>
    %35 = vector.broadcast %34 : vector<8x1xf32> to vector<8x128xf32>
    %36 = arith.addf %32, %35 : vector<8x128xf32>
    %cst_20 = arith.constant dense<0.000000e+00> : vector<8x8xf32>
    %37 = tpu.matmul %31, %13, %cst_20 {dimension_numbers = #tpu.dot_dimension_numbers<[1], [0], [0], [1], [0, 0, 1, 1], [], []>} : vector<8x8xf32>, vector<8x8xf32>, vector<8x8xf32> -> vector<8x8xf32>
    %c0_21 = arith.constant 0 : index
    %c0_22 = arith.constant 0 : index
    %38 = vector.load %arg11[%c0_21, %c0_22] : memref<8x32xf32, #tpu.memory_space<vmem>>, vector<8x8xf32>
    %39 = vector.broadcast %28 : vector<8x1xf32> to vector<8x8xf32>
    %40 = arith.mulf %39, %38 : vector<8x8xf32>
    %41 = arith.addf %40, %37 : vector<8x8xf32>
    %c0_23 = arith.constant 0 : index
    %c0_24 = arith.constant 0 : index
    %42 = vector.load %arg11[%c0_23, %c0_24] : memref<8x32xf32, #tpu.memory_space<vmem>>, vector<8x8xf32>
    tpu.vector_store %arg11[%c0_23, %c0_24], %41 {strides = array<i32>} : memref<8x32xf32, #tpu.memory_space<vmem>>, vector<8x8xf32>,
    %c0_25 = arith.constant 0 : index
    %c0_26 = arith.constant 0 : index
    %c0_27 = arith.constant 0 : index
    %43 = vector.load %arg9[%c0_25, %c0_26, %c0_27] : memref<4x8x128xf32, #tpu.memory_space<vmem>>, vector<1x8x128xf32>
    %44 = vector.shape_cast %43 : vector<1x8x128xf32> to vector<8x128xf32>
    %45 = vector.shape_cast %24 : vector<8x128xf32> to vector<1x8x128xf32>
    tpu.vector_store %arg9[%c0_25, %c0_26, %c0_27], %45 {strides = array<i32>} : memref<4x8x128xf32, #tpu.memory_space<vmem>>, vector<1x8x128xf32>,
    %c0_28 = arith.constant 0 : index
    %c0_29 = arith.constant 0 : index
    %c0_30 = arith.constant 0 : index
    %46 = vector.load %arg10[%c0_28, %c0_29, %c0_30] : memref<4x8x128xf32, #tpu.memory_space<vmem>>, vector<1x8x128xf32>
    %47 = vector.shape_cast %46 : vector<1x8x128xf32> to vector<8x128xf32>
    %48 = vector.shape_cast %36 : vector<8x128xf32> to vector<1x8x128xf32>
    tpu.vector_store %arg10[%c0_28, %c0_29, %c0_30], %48 {strides = array<i32>} : memref<4x8x128xf32, #tpu.memory_space<vmem>>, vector<1x8x128xf32>,
    %49 = vector.extract_strided_slice %4 {offsets = [0, 8], sizes = [8, 8], strides = [1, 1]} : vector<8x32xf32> to vector<8x8xf32>
    %50 = vector.extract_strided_slice %6 {offsets = [0, 8], sizes = [8, 8], strides = [1, 1]} : vector<8x32xf32> to vector<8x8xf32>
    %51 = vector.extract_strided_slice %8 {offsets = [0, 8], sizes = [8, 8], strides = [1, 1]} : vector<8x32xf32> to vector<8x8xf32>
    %cst_31 = arith.constant dense<0.000000e+00> : vector<8x8xf32>
    %52 = tpu.matmul %49, %50, %cst_31 {dimension_numbers = #tpu.dot_dimension_numbers<[1], [1], [0], [0], [0, 0, 1, 0], [], []>} : vector<8x8xf32>, vector<8x8xf32>, vector<8x8xf32> -> vector<8x8xf32>
    %53 = vector.broadcast %10 : vector<1x8xf32> to vector<8x8xf32>
    %54 = arith.addf %52, %53 : vector<8x8xf32>
    %c1 = arith.constant 1 : index
    %c0_32 = arith.constant 0 : index
    %c0_33 = arith.constant 0 : index
    %55 = vector.load %arg9[%c1, %c0_32, %c0_33] : memref<4x8x128xf32, #tpu.memory_space<vmem>>, vector<1x8x128xf32>
    %56 = vector.shape_cast %55 : vector<1x8x128xf32> to vector<8x128xf32>
    %c1_34 = arith.constant 1 : index
    %c0_35 = arith.constant 0 : index
    %c0_36 = arith.constant 0 : index
    %57 = vector.load %arg10[%c1_34, %c0_35, %c0_36] : memref<4x8x128xf32, #tpu.memory_space<vmem>>, vector<1x8x128xf32>
    %58 = vector.shape_cast %57 : vector<1x8x128xf32> to vector<8x128xf32>
    %cst_37 = arith.constant dense<0xFF800000> : vector<8xf32>
    %59 = vector.multi_reduction <maximumf>, %54, %cst_37 [1] : vector<8x8xf32> to vector<8xf32>
    %60 = vector.shape_cast %59 : vector<8xf32> to vector<8x1xf32>
    %61 = vector.broadcast %60 : vector<8x1xf32> to vector<8x128xf32>
    %62 = arith.maximumf %56, %61 : vector<8x128xf32>
    %63 = arith.subf %56, %62 : vector<8x128xf32>
    %64 = math.exp %63 : vector<8x128xf32>
    %65 = vector.extract_strided_slice %62 {offsets = [0, 0], sizes = [8, 1], strides = [1, 1]} : vector<8x128xf32> to vector<8x1xf32>
    %66 = vector.extract_strided_slice %64 {offsets = [0, 0], sizes = [8, 1], strides = [1, 1]} : vector<8x128xf32> to vector<8x1xf32>
    %67 = vector.broadcast %65 : vector<8x1xf32> to vector<8x8xf32>
    %68 = arith.subf %54, %67 : vector<8x8xf32>
    %69 = math.exp %68 : vector<8x8xf32>
    %70 = arith.mulf %64, %58 : vector<8x128xf32>
    %cst_38 = arith.constant dense<0.000000e+00> : vector<8xf32>
    %71 = vector.multi_reduction <add>, %69, %cst_38 [1] : vector<8x8xf32> to vector<8xf32>
    %72 = vector.shape_cast %71 : vector<8xf32> to vector<8x1xf32>
    %73 = vector.broadcast %72 : vector<8x1xf32> to vector<8x128xf32>
    %74 = arith.addf %70, %73 : vector<8x128xf32>
    %cst_39 = arith.constant dense<0.000000e+00> : vector<8x8xf32>
    %75 = tpu.matmul %69, %51, %cst_39 {dimension_numbers = #tpu.dot_dimension_numbers<[1], [0], [0], [1], [0, 0, 1, 1], [], []>} : vector<8x8xf32>, vector<8x8xf32>, vector<8x8xf32> -> vector<8x8xf32>
    %c0_40 = arith.constant 0 : index
    %c8 = arith.constant 8 : index
    %76 = vector.load %arg11[%c0_40, %c8] : memref<8x32xf32, #tpu.memory_space<vmem>>, vector<8x8xf32>
    %77 = vector.broadcast %66 : vector<8x1xf32> to vector<8x8xf32>
    %78 = arith.mulf %77, %76 : vector<8x8xf32>
    %79 = arith.addf %78, %75 : vector<8x8xf32>
    %c0_41 = arith.constant 0 : index
    %c8_42 = arith.constant 8 : index
    %80 = vector.load %arg11[%c0_41, %c8_42] : memref<8x32xf32, #tpu.memory_space<vmem>>, vector<8x8xf32>
    tpu.vector_store %arg11[%c0_41, %c8_42], %79 {strides = array<i32>} : memref<8x32xf32, #tpu.memory_space<vmem>>, vector<8x8xf32>,
    %c1_43 = arith.constant 1 : index
    %c0_44 = arith.constant 0 : index
    %c0_45 = arith.constant 0 : index
    %81 = vector.load %arg9[%c1_43, %c0_44, %c0_45] : memref<4x8x128xf32, #tpu.memory_space<vmem>>, vector<1x8x128xf32>
    %82 = vector.shape_cast %81 : vector<1x8x128xf32> to vector<8x128xf32>
    %83 = vector.shape_cast %62 : vector<8x128xf32> to vector<1x8x128xf32>
    tpu.vector_store %arg9[%c1_43, %c0_44, %c0_45], %83 {strides = array<i32>} : memref<4x8x128xf32, #tpu.memory_space<vmem>>, vector<1x8x128xf32>,
    %c1_46 = arith.constant 1 : index
    %c0_47 = arith.constant 0 : index
    %c0_48 = arith.constant 0 : index
    %84 = vector.load %arg10[%c1_46, %c0_47, %c0_48] : memref<4x8x128xf32, #tpu.memory_space<vmem>>, vector<1x8x128xf32>
    %85 = vector.shape_cast %84 : vector<1x8x128xf32> to vector<8x128xf32>
    %86 = vector.shape_cast %74 : vector<8x128xf32> to vector<1x8x128xf32>
    tpu.vector_store %arg10[%c1_46, %c0_47, %c0_48], %86 {strides = array<i32>} : memref<4x8x128xf32, #tpu.memory_space<vmem>>, vector<1x8x128xf32>,
    %87 = vector.extract_strided_slice %4 {offsets = [0, 16], sizes = [8, 8], strides = [1, 1]} : vector<8x32xf32> to vector<8x8xf32>
    %88 = vector.extract_strided_slice %6 {offsets = [0, 16], sizes = [8, 8], strides = [1, 1]} : vector<8x32xf32> to vector<8x8xf32>
    %89 = vector.extract_strided_slice %8 {offsets = [0, 16], sizes = [8, 8], strides = [1, 1]} : vector<8x32xf32> to vector<8x8xf32>
    %cst_49 = arith.constant dense<0.000000e+00> : vector<8x8xf32>
    %90 = tpu.matmul %87, %88, %cst_49 {dimension_numbers = #tpu.dot_dimension_numbers<[1], [1], [0], [0], [0, 0, 1, 0], [], []>} : vector<8x8xf32>, vector<8x8xf32>, vector<8x8xf32> -> vector<8x8xf32>
    %91 = vector.broadcast %10 : vector<1x8xf32> to vector<8x8xf32>
    %92 = arith.addf %90, %91 : vector<8x8xf32>
    %c2 = arith.constant 2 : index
    %c0_50 = arith.constant 0 : index
    %c0_51 = arith.constant 0 : index
    %93 = vector.load %arg9[%c2, %c0_50, %c0_51] : memref<4x8x128xf32, #tpu.memory_space<vmem>>, vector<1x8x128xf32>
    %94 = vector.shape_cast %93 : vector<1x8x128xf32> to vector<8x128xf32>
    %c2_52 = arith.constant 2 : index
    %c0_53 = arith.constant 0 : index
    %c0_54 = arith.constant 0 : index
    %95 = vector.load %arg10[%c2_52, %c0_53, %c0_54] : memref<4x8x128xf32, #tpu.memory_space<vmem>>, vector<1x8x128xf32>
    %96 = vector.shape_cast %95 : vector<1x8x128xf32> to vector<8x128xf32>
    %cst_55 = arith.constant dense<0xFF800000> : vector<8xf32>
    %97 = vector.multi_reduction <maximumf>, %92, %cst_55 [1] : vector<8x8xf32> to vector<8xf32>
    %98 = vector.shape_cast %97 : vector<8xf32> to vector<8x1xf32>
    %99 = vector.broadcast %98 : vector<8x1xf32> to vector<8x128xf32>
    %100 = arith.maximumf %94, %99 : vector<8x128xf32>
    %101 = arith.subf %94, %100 : vector<8x128xf32>
    %102 = math.exp %101 : vector<8x128xf32>
    %103 = vector.extract_strided_slice %100 {offsets = [0, 0], sizes = [8, 1], strides = [1, 1]} : vector<8x128xf32> to vector<8x1xf32>
    %104 = vector.extract_strided_slice %102 {offsets = [0, 0], sizes = [8, 1], strides = [1, 1]} : vector<8x128xf32> to vector<8x1xf32>
    %105 = vector.broadcast %103 : vector<8x1xf32> to vector<8x8xf32>
    %106 = arith.subf %92, %105 : vector<8x8xf32>
    %107 = math.exp %106 : vector<8x8xf32>
    %108 = arith.mulf %102, %96 : vector<8x128xf32>
    %cst_56 = arith.constant dense<0.000000e+00> : vector<8xf32>
    %109 = vector.multi_reduction <add>, %107, %cst_56 [1] : vector<8x8xf32> to vector<8xf32>
    %110 = vector.shape_cast %109 : vector<8xf32> to vector<8x1xf32>
    %111 = vector.broadcast %110 : vector<8x1xf32> to vector<8x128xf32>
    %112 = arith.addf %108, %111 : vector<8x128xf32>
    %cst_57 = arith.constant dense<0.000000e+00> : vector<8x8xf32>
    %113 = tpu.matmul %107, %89, %cst_57 {dimension_numbers = #tpu.dot_dimension_numbers<[1], [0], [0], [1], [0, 0, 1, 1], [], []>} : vector<8x8xf32>, vector<8x8xf32>, vector<8x8xf32> -> vector<8x8xf32>
    %c0_58 = arith.constant 0 : index
    %c16 = arith.constant 16 : index
    %114 = vector.load %arg11[%c0_58, %c16] : memref<8x32xf32, #tpu.memory_space<vmem>>, vector<8x8xf32>
    %115 = vector.broadcast %104 : vector<8x1xf32> to vector<8x8xf32>
    %116 = arith.mulf %115, %114 : vector<8x8xf32>
    %117 = arith.addf %116, %113 : vector<8x8xf32>
    %c0_59 = arith.constant 0 : index
    %c16_60 = arith.constant 16 : index
    %118 = vector.load %arg11[%c0_59, %c16_60] : memref<8x32xf32, #tpu.memory_space<vmem>>, vector<8x8xf32>
    tpu.vector_store %arg11[%c0_59, %c16_60], %117 {strides = array<i32>} : memref<8x32xf32, #tpu.memory_space<vmem>>, vector<8x8xf32>,
    %c2_61 = arith.constant 2 : index
    %c0_62 = arith.constant 0 : index
    %c0_63 = arith.constant 0 : index
    %119 = vector.load %arg9[%c2_61, %c0_62, %c0_63] : memref<4x8x128xf32, #tpu.memory_space<vmem>>, vector<1x8x128xf32>
    %120 = vector.shape_cast %119 : vector<1x8x128xf32> to vector<8x128xf32>
    %121 = vector.shape_cast %100 : vector<8x128xf32> to vector<1x8x128xf32>
    tpu.vector_store %arg9[%c2_61, %c0_62, %c0_63], %121 {strides = array<i32>} : memref<4x8x128xf32, #tpu.memory_space<vmem>>, vector<1x8x128xf32>,
    %c2_64 = arith.constant 2 : index
    %c0_65 = arith.constant 0 : index
    %c0_66 = arith.constant 0 : index
    %122 = vector.load %arg10[%c2_64, %c0_65, %c0_66] : memref<4x8x128xf32, #tpu.memory_space<vmem>>, vector<1x8x128xf32>
    %123 = vector.shape_cast %122 : vector<1x8x128xf32> to vector<8x128xf32>
    %124 = vector.shape_cast %112 : vector<8x128xf32> to vector<1x8x128xf32>
    tpu.vector_store %arg10[%c2_64, %c0_65, %c0_66], %124 {strides = array<i32>} : memref<4x8x128xf32, #tpu.memory_space<vmem>>, vector<1x8x128xf32>,
    %125 = vector.extract_strided_slice %4 {offsets = [0, 24], sizes = [8, 8], strides = [1, 1]} : vector<8x32xf32> to vector<8x8xf32>
    %126 = vector.extract_strided_slice %6 {offsets = [0, 24], sizes = [8, 8], strides = [1, 1]} : vector<8x32xf32> to vector<8x8xf32>
    %127 = vector.extract_strided_slice %8 {offsets = [0, 24], sizes = [8, 8], strides = [1, 1]} : vector<8x32xf32> to vector<8x8xf32>
    %cst_67 = arith.constant dense<0.000000e+00> : vector<8x8xf32>
    %128 = tpu.matmul %125, %126, %cst_67 {dimension_numbers = #tpu.dot_dimension_numbers<[1], [1], [0], [0], [0, 0, 1, 0], [], []>} : vector<8x8xf32>, vector<8x8xf32>, vector<8x8xf32> -> vector<8x8xf32>
    %129 = vector.broadcast %10 : vector<1x8xf32> to vector<8x8xf32>
    %130 = arith.addf %128, %129 : vector<8x8xf32>
    %c3 = arith.constant 3 : index
    %c0_68 = arith.constant 0 : index
    %c0_69 = arith.constant 0 : index
    %131 = vector.load %arg9[%c3, %c0_68, %c0_69] : memref<4x8x128xf32, #tpu.memory_space<vmem>>, vector<1x8x128xf32>
    %132 = vector.shape_cast %131 : vector<1x8x128xf32> to vector<8x128xf32>
    %c3_70 = arith.constant 3 : index
    %c0_71 = arith.constant 0 : index
    %c0_72 = arith.constant 0 : index
    %133 = vector.load %arg10[%c3_70, %c0_71, %c0_72] : memref<4x8x128xf32, #tpu.memory_space<vmem>>, vector<1x8x128xf32>
    %134 = vector.shape_cast %133 : vector<1x8x128xf32> to vector<8x128xf32>
    %cst_73 = arith.constant dense<0xFF800000> : vector<8xf32>
    %135 = vector.multi_reduction <maximumf>, %130, %cst_73 [1] : vector<8x8xf32> to vector<8xf32>
    %136 = vector.shape_cast %135 : vector<8xf32> to vector<8x1xf32>
    %137 = vector.broadcast %136 : vector<8x1xf32> to vector<8x128xf32>
    %138 = arith.maximumf %132, %137 : vector<8x128xf32>
    %139 = arith.subf %132, %138 : vector<8x128xf32>
    %140 = math.exp %139 : vector<8x128xf32>
    %141 = vector.extract_strided_slice %138 {offsets = [0, 0], sizes = [8, 1], strides = [1, 1]} : vector<8x128xf32> to vector<8x1xf32>
    %142 = vector.extract_strided_slice %140 {offsets = [0, 0], sizes = [8, 1], strides = [1, 1]} : vector<8x128xf32> to vector<8x1xf32>
    %143 = vector.broadcast %141 : vector<8x1xf32> to vector<8x8xf32>
    %144 = arith.subf %130, %143 : vector<8x8xf32>
    %145 = math.exp %144 : vector<8x8xf32>
    %146 = arith.mulf %140, %134 : vector<8x128xf32>
    %cst_74 = arith.constant dense<0.000000e+00> : vector<8xf32>
    %147 = vector.multi_reduction <add>, %145, %cst_74 [1] : vector<8x8xf32> to vector<8xf32>
    %148 = vector.shape_cast %147 : vector<8xf32> to vector<8x1xf32>
    %149 = vector.broadcast %148 : vector<8x1xf32> to vector<8x128xf32>
    %150 = arith.addf %146, %149 : vector<8x128xf32>
    %cst_75 = arith.constant dense<0.000000e+00> : vector<8x8xf32>
    %151 = tpu.matmul %145, %127, %cst_75 {dimension_numbers = #tpu.dot_dimension_numbers<[1], [0], [0], [1], [0, 0, 1, 1], [], []>} : vector<8x8xf32>, vector<8x8xf32>, vector<8x8xf32> -> vector<8x8xf32>
    %c0_76 = arith.constant 0 : index
    %c24 = arith.constant 24 : index
    %152 = vector.load %arg11[%c0_76, %c24] : memref<8x32xf32, #tpu.memory_space<vmem>>, vector<8x8xf32>
    %153 = vector.broadcast %142 : vector<8x1xf32> to vector<8x8xf32>
    %154 = arith.mulf %153, %152 : vector<8x8xf32>
    %155 = arith.addf %154, %151 : vector<8x8xf32>
    %c0_77 = arith.constant 0 : index
    %c24_78 = arith.constant 24 : index
    %156 = vector.load %arg11[%c0_77, %c24_78] : memref<8x32xf32, #tpu.memory_space<vmem>>, vector<8x8xf32>
    tpu.vector_store %arg11[%c0_77, %c24_78], %155 {strides = array<i32>} : memref<8x32xf32, #tpu.memory_space<vmem>>, vector<8x8xf32>,
    %c3_79 = arith.constant 3 : index
    %c0_80 = arith.constant 0 : index
    %c0_81 = arith.constant 0 : index
    %157 = vector.load %arg9[%c3_79, %c0_80, %c0_81] : memref<4x8x128xf32, #tpu.memory_space<vmem>>, vector<1x8x128xf32>
    %158 = vector.shape_cast %157 : vector<1x8x128xf32> to vector<8x128xf32>
    %159 = vector.shape_cast %138 : vector<8x128xf32> to vector<1x8x128xf32>
    tpu.vector_store %arg9[%c3_79, %c0_80, %c0_81], %159 {strides = array<i32>} : memref<4x8x128xf32, #tpu.memory_space<vmem>>, vector<1x8x128xf32>,
    %c3_82 = arith.constant 3 : index
    %c0_83 = arith.constant 0 : index
    %c0_84 = arith.constant 0 : index
    %160 = vector.load %arg10[%c3_82, %c0_83, %c0_84] : memref<4x8x128xf32, #tpu.memory_space<vmem>>, vector<1x8x128xf32>
    %161 = vector.shape_cast %160 : vector<1x8x128xf32> to vector<8x128xf32>
    %162 = vector.shape_cast %150 : vector<8x128xf32> to vector<1x8x128xf32>
    tpu.vector_store %arg10[%c3_82, %c0_83, %c0_84], %162 {strides = array<i32>} : memref<4x8x128xf32, #tpu.memory_space<vmem>>, vector<1x8x128xf32>,
    %c0_i32_85 = arith.constant 0 : i32
    %163 = arith.cmpi eq, %arg3, %c0_i32_85 : i32
    %164 = arith.extui %163 : i1 to i32
    %c0_i32_86 = arith.constant 0 : i32
    %165 = arith.cmpi ne, %164, %c0_i32_86 : i32
    scf.if %165 {
      %c0_87 = arith.constant 0 : index
      %c0_88 = arith.constant 0 : index
      %c0_89 = arith.constant 0 : index
      %166 = vector.load %arg10[%c0_87, %c0_88, %c0_89] : memref<4x8x128xf32, #tpu.memory_space<vmem>>, vector<1x8x128xf32>
      %167 = vector.shape_cast %166 : vector<1x8x128xf32> to vector<8x128xf32>
      %168 = vector.extract_strided_slice %167 {offsets = [0, 0], sizes = [8, 1], strides = [1, 1]} : vector<8x128xf32> to vector<8x1xf32>
      %169 = tpu.reciprocal %168 {approx = true} : vector<8x1xf32> -> vector<8x1xf32>
      %170 = arith.mulf %168, %169 : vector<8x1xf32>
      %cst_90 = arith.constant 2.000000e+00 : f32
      %171 = vector.broadcast %cst_90 : f32 to vector<8x1xf32>
      %172 = arith.subf %171, %170 : vector<8x1xf32>
      %173 = arith.mulf %169, %172 : vector<8x1xf32>
      %174 = arith.mulf %168, %173 : vector<8x1xf32>
      %cst_91 = arith.constant 2.000000e+00 : f32
      %175 = vector.broadcast %cst_91 : f32 to vector<8x1xf32>
      %176 = arith.subf %175, %174 : vector<8x1xf32>
      %177 = arith.mulf %173, %176 : vector<8x1xf32>
      %c0_92 = arith.constant 0 : index
      %c0_93 = arith.constant 0 : index
      %178 = vector.load %arg11[%c0_92, %c0_93] : memref<8x32xf32, #tpu.memory_space<vmem>>, vector<8x8xf32>
      %179 = vector.broadcast %177 : vector<8x1xf32> to vector<8x8xf32>
      %180 = arith.mulf %178, %179 : vector<8x8xf32>
      %c0_94 = arith.constant 0 : index
      %c0_95 = arith.constant 0 : index
      %181 = vector.load %arg11[%c0_94, %c0_95] : memref<8x32xf32, #tpu.memory_space<vmem>>, vector<8x8xf32>
      tpu.vector_store %arg11[%c0_94, %c0_95], %180 {strides = array<i32>} : memref<8x32xf32, #tpu.memory_space<vmem>>, vector<8x8xf32>,
      %c1_96 = arith.constant 1 : index
      %c0_97 = arith.constant 0 : index
      %c0_98 = arith.constant 0 : index
      %182 = vector.load %arg10[%c1_96, %c0_97, %c0_98] : memref<4x8x128xf32, #tpu.memory_space<vmem>>, vector<1x8x128xf32>
      %183 = vector.shape_cast %182 : vector<1x8x128xf32> to vector<8x128xf32>
      %184 = vector.extract_strided_slice %183 {offsets = [0, 0], sizes = [8, 1], strides = [1, 1]} : vector<8x128xf32> to vector<8x1xf32>
      %185 = tpu.reciprocal %184 {approx = true} : vector<8x1xf32> -> vector<8x1xf32>
      %186 = arith.mulf %184, %185 : vector<8x1xf32>
      %cst_99 = arith.constant 2.000000e+00 : f32
      %187 = vector.broadcast %cst_99 : f32 to vector<8x1xf32>
      %188 = arith.subf %187, %186 : vector<8x1xf32>
      %189 = arith.mulf %185, %188 : vector<8x1xf32>
      %190 = arith.mulf %184, %189 : vector<8x1xf32>
      %cst_100 = arith.constant 2.000000e+00 : f32
      %191 = vector.broadcast %cst_100 : f32 to vector<8x1xf32>
      %192 = arith.subf %191, %190 : vector<8x1xf32>
      %193 = arith.mulf %189, %192 : vector<8x1xf32>
      %c0_101 = arith.constant 0 : index
      %c8_102 = arith.constant 8 : index
      %194 = vector.load %arg11[%c0_101, %c8_102] : memref<8x32xf32, #tpu.memory_space<vmem>>, vector<8x8xf32>
      %195 = vector.broadcast %193 : vector<8x1xf32> to vector<8x8xf32>
      %196 = arith.mulf %194, %195 : vector<8x8xf32>
      %c0_103 = arith.constant 0 : index
      %c8_104 = arith.constant 8 : index
      %197 = vector.load %arg11[%c0_103, %c8_104] : memref<8x32xf32, #tpu.memory_space<vmem>>, vector<8x8xf32>
      tpu.vector_store %arg11[%c0_103, %c8_104], %196 {strides = array<i32>} : memref<8x32xf32, #tpu.memory_space<vmem>>, vector<8x8xf32>,
      %c2_105 = arith.constant 2 : index
      %c0_106 = arith.constant 0 : index
      %c0_107 = arith.constant 0 : index
      %198 = vector.load %arg10[%c2_105, %c0_106, %c0_107] : memref<4x8x128xf32, #tpu.memory_space<vmem>>, vector<1x8x128xf32>
      %199 = vector.shape_cast %198 : vector<1x8x128xf32> to vector<8x128xf32>
      %200 = vector.extract_strided_slice %199 {offsets = [0, 0], sizes = [8, 1], strides = [1, 1]} : vector<8x128xf32> to vector<8x1xf32>
      %201 = tpu.reciprocal %200 {approx = true} : vector<8x1xf32> -> vector<8x1xf32>
      %202 = arith.mulf %200, %201 : vector<8x1xf32>
      %cst_108 = arith.constant 2.000000e+00 : f32
      %203 = vector.broadcast %cst_108 : f32 to vector<8x1xf32>
      %204 = arith.subf %203, %202 : vector<8x1xf32>
      %205 = arith.mulf %201, %204 : vector<8x1xf32>
      %206 = arith.mulf %200, %205 : vector<8x1xf32>
      %cst_109 = arith.constant 2.000000e+00 : f32
      %207 = vector.broadcast %cst_109 : f32 to vector<8x1xf32>
      %208 = arith.subf %207, %206 : vector<8x1xf32>
      %209 = arith.mulf %205, %208 : vector<8x1xf32>
      %c0_110 = arith.constant 0 : index
      %c16_111 = arith.constant 16 : index
      %210 = vector.load %arg11[%c0_110, %c16_111] : memref<8x32xf32, #tpu.memory_space<vmem>>, vector<8x8xf32>
      %211 = vector.broadcast %209 : vector<8x1xf32> to vector<8x8xf32>
      %212 = arith.mulf %210, %211 : vector<8x8xf32>
      %c0_112 = arith.constant 0 : index
      %c16_113 = arith.constant 16 : index
      %213 = vector.load %arg11[%c0_112, %c16_113] : memref<8x32xf32, #tpu.memory_space<vmem>>, vector<8x8xf32>
      tpu.vector_store %arg11[%c0_112, %c16_113], %212 {strides = array<i32>} : memref<8x32xf32, #tpu.memory_space<vmem>>, vector<8x8xf32>,
      %c3_114 = arith.constant 3 : index
      %c0_115 = arith.constant 0 : index
      %c0_116 = arith.constant 0 : index
      %214 = vector.load %arg10[%c3_114, %c0_115, %c0_116] : memref<4x8x128xf32, #tpu.memory_space<vmem>>, vector<1x8x128xf32>
      %215 = vector.shape_cast %214 : vector<1x8x128xf32> to vector<8x128xf32>
      %216 = vector.extract_strided_slice %215 {offsets = [0, 0], sizes = [8, 1], strides = [1, 1]} : vector<8x128xf32> to vector<8x1xf32>
      %217 = tpu.reciprocal %216 {approx = true} : vector<8x1xf32> -> vector<8x1xf32>
      %218 = arith.mulf %216, %217 : vector<8x1xf32>
      %cst_117 = arith.constant 2.000000e+00 : f32
      %219 = vector.broadcast %cst_117 : f32 to vector<8x1xf32>
      %220 = arith.subf %219, %218 : vector<8x1xf32>
      %221 = arith.mulf %217, %220 : vector<8x1xf32>
      %222 = arith.mulf %216, %221 : vector<8x1xf32>
      %cst_118 = arith.constant 2.000000e+00 : f32
      %223 = vector.broadcast %cst_118 : f32 to vector<8x1xf32>
      %224 = arith.subf %223, %222 : vector<8x1xf32>
      %225 = arith.mulf %221, %224 : vector<8x1xf32>
      %c0_119 = arith.constant 0 : index
      %c24_120 = arith.constant 24 : index
      %226 = vector.load %arg11[%c0_119, %c24_120] : memref<8x32xf32, #tpu.memory_space<vmem>>, vector<8x8xf32>
      %227 = vector.broadcast %225 : vector<8x1xf32> to vector<8x8xf32>
      %228 = arith.mulf %226, %227 : vector<8x8xf32>
      %c0_121 = arith.constant 0 : index
      %c24_122 = arith.constant 24 : index
      %229 = vector.load %arg11[%c0_121, %c24_122] : memref<8x32xf32, #tpu.memory_space<vmem>>, vector<8x8xf32>
      tpu.vector_store %arg11[%c0_121, %c24_122], %228 {strides = array<i32>} : memref<8x32xf32, #tpu.memory_space<vmem>>, vector<8x8xf32>,
      %c0_123 = arith.constant 0 : index
      %c0_124 = arith.constant 0 : index
      %230 = vector.load %arg11[%c0_123, %c0_124] : memref<8x32xf32, #tpu.memory_space<vmem>>, vector<8x32xf32>
      %c0_125 = arith.constant 0 : index
      %c0_126 = arith.constant 0 : index
      %c0_127 = arith.constant 0 : index
      %231 = vector.load %arg8[%c0_125, %c0_126, %c0_127] : memref<1x8x32xf32, #tpu.memory_space<vmem>>, vector<1x8x32xf32>
      %232 = vector.shape_cast %231 : vector<1x8x32xf32> to vector<8x32xf32>
      %233 = vector.shape_cast %230 : vector<8x32xf32> to vector<1x8x32xf32>
      tpu.vector_store %arg8[%c0_125, %c0_126, %c0_127], %233 {strides = array<i32>} : memref<1x8x32xf32, #tpu.memory_space<vmem>>, vector<1x8x32xf32>,
    } else {
    }
    return
  }
  func.func @transform_0(%arg0: i32, %arg1: i32, %arg2: i32, %arg3: i32) -> (i32, i32, i32) {
    %c0_i32 = arith.constant 0 : i32
    return %arg0, %arg2, %arg1 : i32, i32, i32
  }
  func.func @transform_1(%arg0: i32, %arg1: i32, %arg2: i32, %arg3: i32) -> (i32, i32, i32) {
    %c0_i32 = arith.constant 0 : i32
    return %arg0, %arg3, %arg1 : i32, i32, i32
  }
  func.func @transform_2(%arg0: i32, %arg1: i32, %arg2: i32, %arg3: i32) -> (i32, i32, i32) {
    %c0_i32 = arith.constant 0 : i32
    return %arg0, %arg3, %arg1 : i32, i32, i32
  }
  func.func @transform_3(%arg0: i32, %arg1: i32, %arg2: i32, %arg3: i32) -> (i32, i32, i32) {
    %c0_i32 = arith.constant 0 : i32
    %c0_i32_0 = arith.constant 0 : i32
    return %arg0, %c0_i32, %arg3 : i32, i32, i32
  }
  func.func @transform_4(%arg0: i32, %arg1: i32, %arg2: i32, %arg3: i32) -> (i32, i32, i32) {
    %c0_i32 = arith.constant 0 : i32
    return %arg0, %arg2, %arg1 : i32, i32, i32
  }
}

module attributes {stable_mosaic.version = 11 : i64} {
  func.func @_linear_kernel(%arg0: i32, %arg1: i32, %arg2: memref<16x32xf32, #tpu.memory_space<vmem>>, %arg3: memref<32x32xf32, #tpu.memory_space<vmem>>, %arg4: memref<1x32xf32, #tpu.memory_space<vmem>>, %arg5: memref<16x32xf32, #tpu.memory_space<vmem>>) attributes {dimension_semantics = [#tpu.dimension_semantics<parallel>, #tpu.dimension_semantics<parallel>], iteration_bounds = array<i64: 1, 1>, scalar_prefetch = 0 : i64, scratch_operands = 0 : i64, tpu.core_type = #tpu.core_type<tc>, window_params = [{transform_indices = @transform_0, window_bounds = array<i64: 16, 32>}, {transform_indices = @transform_1, window_bounds = array<i64: 32, 32>}, {transform_indices = @transform_2, window_bounds = array<i64: 1, 32>}, {transform_indices = @transform_3, window_bounds = array<i64: 16, 32>}]} {
    %c0 = arith.constant 0 : index
    %c0_0 = arith.constant 0 : index
    %0 = vector.load %arg2[%c0, %c0_0] : memref<16x32xf32, #tpu.memory_space<vmem>>, vector<16x32xf32>
    %c0_1 = arith.constant 0 : index
    %c0_2 = arith.constant 0 : index
    %1 = vector.load %arg3[%c0_1, %c0_2] : memref<32x32xf32, #tpu.memory_space<vmem>>, vector<32x32xf32>
    %cst = arith.constant dense<0.000000e+00> : vector<16x32xf32>
    %2 = tpu.matmul %0, %1, %cst {dimension_numbers = #tpu.dot_dimension_numbers<[1], [0], [0], [1], [0, 0, 1, 1], [], []>} : vector<16x32xf32>, vector<32x32xf32>, vector<16x32xf32> -> vector<16x32xf32>
    %c0_3 = arith.constant 0 : index
    %c0_4 = arith.constant 0 : index
    %3 = vector.load %arg4[%c0_3, %c0_4] : memref<1x32xf32, #tpu.memory_space<vmem>>, vector<1x32xf32>
    %4 = vector.broadcast %3 : vector<1x32xf32> to vector<16x32xf32>
    %5 = arith.addf %2, %4 : vector<16x32xf32>
    %c0_5 = arith.constant 0 : index
    %c0_6 = arith.constant 0 : index
    %6 = vector.load %arg5[%c0_5, %c0_6] : memref<16x32xf32, #tpu.memory_space<vmem>>, vector<16x32xf32>
    tpu.vector_store %arg5[%c0_5, %c0_6], %5 {strides = array<i32>} : memref<16x32xf32, #tpu.memory_space<vmem>>, vector<16x32xf32>,
    return
  }
  func.func @transform_0(%arg0: i32, %arg1: i32) -> (i32, i32) {
    %c0_i32 = arith.constant 0 : i32
    %c0_i32_0 = arith.constant 0 : i32
    return %arg1, %c0_i32 : i32, i32
  }
  func.func @transform_1(%arg0: i32, %arg1: i32) -> (i32, i32) {
    %c0_i32 = arith.constant 0 : i32
    %c0_i32_0 = arith.constant 0 : i32
    return %c0_i32, %arg0 : i32, i32
  }
  func.func @transform_2(%arg0: i32, %arg1: i32) -> (i32, i32) {
    %c0_i32 = arith.constant 0 : i32
    %c0_i32_0 = arith.constant 0 : i32
    return %c0_i32, %arg0 : i32, i32
  }
  func.func @transform_3(%arg0: i32, %arg1: i32) -> (i32, i32) {
    %c0_i32 = arith.constant 0 : i32
    return %arg1, %arg0 : i32, i32
  }
}

</mosaic_0001>

<llo_original>
// kernel: _lambda_.3
$region0: #{_lambda_.3}
  #allocation0 [shape = 'u32[]', space=smem, size = 0x4, offset = 0x4, fixed_abs, tag = 'smem constant byte address 0x4 - core index']
  #allocation1 [shape = 'u32[144,128]{1,0:T(1,128)}', space=vmem, size = 0x12000, scoped, tag = 'internal scratch']
  %s0 = inlined_call_operand.vmem [shape: f32[16,32], index: 0, kind: input, shape index: {}]
  %s1 = inlined_call_operand.hbm [shape: f32[3,32,32], index: 1, kind: input, shape index: {}]
  %s2 = inlined_call_operand.vmem [shape: f32[3,1,32], index: 2, kind: input, shape index: {}]
  %s3 = inlined_call_operand.vmem [shape: f32[3,16,32], index: 3, kind: output, shape index: {}]
  %s4 = sld [smem:[#allocation0]]
  $region49: #{_lambda_.3} parent=0
    _
  %s6 = ssub.s32 1, %s4
  %s7 = scalar_select 0, %s6, %s4
  $region1: #{_lambda_.3} parent=0
    #allocation2 [shape = 'u8[32768]{0}', space=vmem, size = 0x8000, scoped, tag = 'input window, operand 1']
    #allocation3 [shape = 's32[2]{0}', space=sflag, size = 0x8, scoped, tag = 'scoped memory for _lambda_.3']
    %8 = vsyncpa [#allocation3], 0
    %s9 = scalar_lea.sflag [#allocation3], 1
    %10 = vsyncpa %s9, 0
    loop: start=0, step=1, limit=5
    $region2: #{_lambda_.3} parent=1 // loop_pre_header
      _
    $region3: #{_lambda_.3} parent=1 // loop_header
      %s12 = sphi 0, %s16
      %p13 = scmp.ge.s32.totalorder %s12, 5
      %s19 = sphi 0, %s38
      %s20 = sphi 0, %s34
      %s21 = sphi 0, %s30
      %s22 = sphi 0, %s19
      %s23 = sphi 0, %s20
      %s24 = sphi 0, %s21
      %s25 = sphi 0, %s22
      %s26 = sphi 0, %s23
      %s27 = sphi 0, %s24
      %s41 = sphi 0, %s43
      %s44 = sphi 0, %s41
      %s45 = sphi 0, %s44
      %s61 = sphi 0, %s45
      %s69 = sphi 0, %s71
      %s72 = sphi 0, %s69
      %s73 = sphi 0, %s72
      %s89 = sphi 0, %s73
      %s97 = sphi 0, %s99
      %s100 = sphi 0, %s97
      %s101 = sphi 0, %s100
      %s117 = sphi 0, %s101
      %s127 = sphi 0, %s129
      %s130 = sphi 0, %s127
      %s131 = sphi 0, %s130
      %s147 = sphi 0, %s131
    $region4: #{_lambda_.3} parent=1 // loop_header_branch
      %15 = sbr.rel (%p13) target = $region8
    $region5: #{_lambda_.3} parent=1 // loop_body
      %s17 = ssub.s32 %s12, 1
      %s18 = ssub.s32 %s12, 2
      %s28 = sadd.s32 1, %s21
      %p29 = scmp.ge.s32.totalorder %s28, 1
      %s30 = scalar_select %p29, 0, %s28
      %s31 = sadd.s32 1, %s20
      %s32 = scalar_select %p29, %s31, %s20
      %p33 = scmp.ge.s32.totalorder %s32, 1
      %s34 = scalar_select %p33, 0, %s32
      %s35 = sadd.s32 1, %s19
      %s36 = scalar_select %p33, %s35, %s19
      %p37 = scmp.ge.s32.totalorder %s36, 3
      %s38 = scalar_select %p37, 0, %s36
      %s39 = ssub.s32 %s21, %s30
      %p40 = scmp.eq.s32.totalorder %s39, 0
      %s42 = sadd.s32 %s41, 1
      %s43 = scalar_select %p40, %s41, %s42
      %p46 = pneg %p40
      %p47 = scmp.eq.s32.totalorder %s12, 2
      %p48 = por %p46, %p47
      %p49 = scmp.ne.s32.totalorder %s41, %s44
      %p50 = scmp.eq.s32.totalorder %s12, 0
      %p51 = por %p49, %p50
      %p52 = scmp.ne.s32.totalorder %s41, %s44
      %p53 = scmp.eq.s32.totalorder %s17, 2
      %p54 = por %p52, %p53
      %p55 = scmp.ne.s32.totalorder %s44, %s45
      %p56 = scmp.eq.s32.totalorder %s17, 0
      %p57 = por %p55, %p56
      %p58 = scmp.ne.s32.totalorder %s44, %s45
      %p59 = scmp.eq.s32.totalorder %s18, 2
      %p60 = por %p58, %p59
      %p62 = scmp.ne.s32.totalorder %s45, %s61
      %p63 = scmp.eq.s32.totalorder %s18, 0
      %p64 = por %p62, %p63
      %s65 = ssub.s32 %s19, %s38
      %s66 = ssub.s32 %s20, %s34
      %s67 = sor.u32 %s65, %s66
      %p68 = scmp.eq.s32.totalorder %s67, 0
      %s70 = sadd.s32 %s69, 1
      %s71 = scalar_select %p68, %s69, %s70
      %p74 = pneg %p68
      %p75 = scmp.eq.s32.totalorder %s12, 2
      %p76 = por %p74, %p75
      %p77 = scmp.ne.s32.totalorder %s69, %s72
      %p78 = scmp.eq.s32.totalorder %s12, 0
      %p79 = por %p77, %p78
      %p80 = scmp.ne.s32.totalorder %s69, %s72
      %p81 = scmp.eq.s32.totalorder %s17, 2
      %p82 = por %p80, %p81
      %p83 = scmp.ne.s32.totalorder %s72, %s73
      %p84 = scmp.eq.s32.totalorder %s17, 0
      %p85 = por %p83, %p84
      %p86 = scmp.ne.s32.totalorder %s72, %s73
      %p87 = scmp.eq.s32.totalorder %s18, 2
      %p88 = por %p86, %p87
      %p90 = scmp.ne.s32.totalorder %s73, %s89
      %p91 = scmp.eq.s32.totalorder %s18, 0
      %p92 = por %p90, %p91
      %s93 = ssub.s32 %s19, %s38
      %s94 = ssub.s32 %s20, %s34
      %s95 = sor.u32 %s93, %s94
      %p96 = scmp.eq.s32.totalorder %s95, 0
      %s98 = sadd.s32 %s97, 1
      %s99 = scalar_select %p96, %s97, %s98
      %p102 = pneg %p96
      %p103 = scmp.eq.s32.totalorder %s12, 2
      %p104 = por %p102, %p103
      %p105 = scmp.ne.s32.totalorder %s97, %s100
      %p106 = scmp.eq.s32.totalorder %s12, 0
      %p107 = por %p105, %p106
      %p108 = scmp.ne.s32.totalorder %s97, %s100
      %p109 = scmp.eq.s32.totalorder %s17, 2
      %p110 = por %p108, %p109
      %p111 = scmp.ne.s32.totalorder %s100, %s101
      %p112 = scmp.eq.s32.totalorder %s17, 0
      %p113 = por %p111, %p112
      %p114 = scmp.ne.s32.totalorder %s100, %s101
      %p115 = scmp.eq.s32.totalorder %s18, 2
      %p116 = por %p114, %p115
      %p118 = scmp.ne.s32.totalorder %s101, %s117
      %p119 = scmp.eq.s32.totalorder %s18, 0
      %p120 = por %p118, %p119
      %s121 = ssub.s32 %s19, %s38
      %s122 = ssub.s32 %s21, %s30
      %s123 = sor.u32 %s121, %s122
      %s124 = ssub.s32 %s20, %s34
      %s125 = sor.u32 %s123, %s124
      %p126 = scmp.eq.s32.totalorder %s125, 0
      %s128 = sadd.s32 %s127, 1
      %s129 = scalar_select %p126, %s127, %s128
      %p132 = pneg %p126
      %p133 = scmp.eq.s32.totalorder %s12, 2
      %p134 = por %p132, %p133
      %p135 = scmp.ne.s32.totalorder %s127, %s130
      %p136 = scmp.eq.s32.totalorder %s12, 0
      %p137 = por %p135, %p136
      %p138 = scmp.ne.s32.totalorder %s127, %s130
      %p139 = scmp.eq.s32.totalorder %s17, 2
      %p140 = por %p138, %p139
      %p141 = scmp.ne.s32.totalorder %s130, %s131
      %p142 = scmp.eq.s32.totalorder %s17, 0
      %p143 = por %p141, %p142
      %p144 = scmp.ne.s32.totalorder %s130, %s131
      %p145 = scmp.eq.s32.totalorder %s18, 2
      %p146 = por %p144, %p145
      %p148 = scmp.ne.s32.totalorder %s131, %s147
      %p149 = scmp.eq.s32.totalorder %s18, 0
      %p150 = por %p148, %p149
      %p151 = scmp.le.s32.totalorder 1, %s12
      %p152 = scmp.lt.s32.totalorder %s12, 4
      %p153 = pnand %p151, %p152
      %p154 = pneg %p153
      // Predicated region
      $region9: #{_lambda_.3} parent=5 // pred_check
        _
      $region10: #{_lambda_.3} parent=5 // pred_check_branch
        %156 = sbr.rel (%p153) target = $region12
      $region11: #{_lambda_.3} parent=5 // pred_region
        %s157 = ssub.s32 %s12, 1
        // Predicated region
        $region13: #{_lambda_.3} parent=11 // pred_check
          %p158 = pneg %p57
        $region14: #{_lambda_.3} parent=11 // pred_check_branch
          %160 = sbr.rel (%p158) target = $region16
        $region15: #{_lambda_.3} parent=11 // pred_region
          %s161 = smul.u32 2, %s24
          %p162 = scmp.lt.s32.totalorder %s161, 1
          %s163 = scalar_select %p162, %s161, 1
          %s164 = smul.addr %s163, 8
          %s165 = scalar_lea.vmem %s0, %s164
          %s166 = smul.u32 2, %s24
        $region16: #{_lambda_.3} parent=11 // pred_fallthru
          _
      $region12: #{_lambda_.3} parent=5 // pred_fallthru
        _
      %p167 = scmp.lt.s32.totalorder %s12, 3
      // Predicated region
      $region17: #{_lambda_.3} parent=5 // pred_check
        %p168 = pneg %p167
      $region18: #{_lambda_.3} parent=5 // pred_check_branch
        %170 = sbr.rel (%p168) target = $region20
      $region19: #{_lambda_.3} parent=5 // pred_region
        // Predicated region
        $region21: #{_lambda_.3} parent=19 // pred_check
          %p171 = pneg %p79
        $region22: #{_lambda_.3} parent=19 // pred_check_branch
          %173 = sbr.rel (%p171) target = $region24
        $region23: #{_lambda_.3} parent=19 // pred_region
          %s174 = sand.u32 %s69, 1
          %s175 = scalar_lea.sflag [#allocation3], %s174
          %s176 = sand.u32 %s69, 1
          %s177 = smul.addr %s176, 32
          %s178 = scalar_lea.vmem [#allocation2], %s177
          %s180 = ssub.s32 512, 512
          %181 = vsyncadd %s175, %s180
          %s182 = smul.addr %s19, 4
          %s183 = sadd.s32 %s20, %s182
          %s184 = smul.addr %s183, 128
          %s185 = scalar_lea.hbm %s1, %s184
          %s186 = sshll.u32 %s178, 4
          %s187 = int_to_ptr.vmem [resolvable:$true] %s186
          %192 = dma.hbm_to_vmem [thread:$0]  %s185, 512, %s187, %s175, 128, 128, 8
        $region24: #{_lambda_.3} parent=19 // pred_fallthru
          _
        // Predicated region
        $region25: #{_lambda_.3} parent=19 // pred_check
          %p193 = pneg %p107
        $region26: #{_lambda_.3} parent=19 // pred_check_branch
          %195 = sbr.rel (%p193) target = $region28
        $region27: #{_lambda_.3} parent=19 // pred_region
          %p196 = scmp.lt.s32.totalorder %s19, 2
          %s197 = scalar_select %p196, %s19, 2
          %p198 = scmp.lt.s32.totalorder %s20, 0
          %s199 = scalar_select %p198, %s20, 0
          %s200 = sadd.s32 %s199, %s197
          %s201 = scalar_lea.vmem %s2, %s200
        $region28: #{_lambda_.3} parent=19 // pred_fallthru
          _
      $region20: #{_lambda_.3} parent=5 // pred_fallthru
        _
      %p202 = scmp.le.s32.totalorder 1, %s12
      %p203 = scmp.lt.s32.totalorder %s12, 4
      %p204 = pnand %p202, %p203
      %p205 = pneg %p204
      // Predicated region
      $region29: #{_lambda_.3} parent=5 // pred_check
        _
      $region30: #{_lambda_.3} parent=5 // pred_check_branch
        %207 = sbr.rel (%p204) target = $region32
      $region31: #{_lambda_.3} parent=5 // pred_region
        %s208 = ssub.s32 %s12, 1
        %s209 = sand.u32 %s72, 1
        %s210 = scalar_lea.sflag [#allocation3], %s209
        %s211 = sand.u32 %s72, 1
        %s212 = smul.addr %s211, 32
        %s213 = scalar_lea.vmem [#allocation2], %s212
        // Predicated region
        $region33: #{_lambda_.3} parent=31 // pred_check
          %p214 = pneg %p85
        $region34: #{_lambda_.3} parent=31 // pred_check_branch
          %216 = sbr.rel (%p214) target = $region36
        $region35: #{_lambda_.3} parent=31 // pred_region
          %217 = dma.done %s210, 512
        $region36: #{_lambda_.3} parent=31 // pred_fallthru
          _
        %s218 = smul.u32 2, %s24
        %p219 = scmp.lt.s32.totalorder %s218, 1
        %s220 = scalar_select %p219, %s218, 1
        %s221 = smul.addr %s220, 8
        %s222 = scalar_lea.vmem %s0, %s221
        %p223 = pneg %p57
        %p224 = pneg %p54
        %s225 = sand.u32 %s72, 1
        %s226 = scalar_lea.sflag [#allocation3], %s225
        %s227 = sand.u32 %s72, 1
        %s228 = smul.addr %s227, 32
        %s229 = scalar_lea.vmem [#allocation2], %s228
        %p230 = pneg %p85
        %p231 = pneg %p82
        %p232 = scmp.lt.s32.totalorder %s22, 2
        %s233 = scalar_select %p232, %s22, 2
        %p234 = scmp.lt.s32.totalorder %s23, 0
        %s235 = scalar_select %p234, %s23, 0
        %s236 = sadd.s32 %s235, %s233
        %s237 = scalar_lea.vmem %s2, %s236
        %p238 = pneg %p113
        %p239 = pneg %p110
        %p240 = pneg %p143
        %p241 = pneg %p140
        %s242 = smul.u32 2, %s24
        %p243 = scmp.lt.s32.totalorder %s22, 2
        %s244 = scalar_select %p243, %s22, 2
        %p245 = scmp.lt.s32.totalorder %s242, 1
        %s246 = scalar_select %p245, %s242, 1
        %p247 = scmp.lt.s32.totalorder %s23, 0
        %s248 = scalar_select %p247, %s23, 0
        %s249 = sadd.s32 %s248, %s246
        %s250 = smul.addr %s244, 2
        %s251 = sadd.s32 %s249, %s250
        %s252 = smul.addr %s251, 8
        %s253 = scalar_lea.vmem %s3, %s252
        %s254 = smul.u32 2, %s24
        %p255 = scmp.lt.s32.totalorder %s254, 1
        %s256 = scalar_select %p255, %s254, 1
        %s257 = smul.addr %s256, 8
        %s258 = scalar_lea.vmem %s0, %s257
        %s259 = smul.u32 2, %s24
        %p260 = scmp.lt.s32.totalorder %s22, 2
        %s261 = scalar_select %p260, %s22, 2
        %p262 = scmp.lt.s32.totalorder %s23, 0
        %s263 = scalar_select %p262, %s23, 0
        %s264 = sadd.s32 %s263, %s261
        %s265 = scalar_lea.vmem %s2, %s264
        %s266 = smul.u32 2, %s24
        %p267 = scmp.lt.s32.totalorder %s22, 2
        %s268 = scalar_select %p267, %s22, 2
        %p269 = scmp.lt.s32.totalorder %s266, 1
        %s270 = scalar_select %p269, %s266, 1
        %p271 = scmp.lt.s32.totalorder %s23, 0
        %s272 = scalar_select %p271, %s23, 0
        %s273 = sadd.s32 %s272, %s270
        %s274 = smul.addr %s268, 2
        %s275 = sadd.s32 %s273, %s274
        %s276 = smul.addr %s275, 8
        %s277 = scalar_lea.vmem %s3, %s276
        %s278 = smul.u32 2, %s24
        %v279 = vld [vmem:[%s258] sm:$0xff]
        %v280 = vld [vmem:[%s258 + $0x8] sm:$0xff]
        %v281 = vld [vmem:[%s213] sm:$0xff]
        %v282 = vld [vmem:[%s213 + $0x8] sm:$0xff]
        %v283 = vld [vmem:[%s213 + $0x10] sm:$0xff]
        %v284 = vld [vmem:[%s213 + $0x18] sm:$0xff]
        %v285 = vld [vmem:[%s265] sm:$0x1]
        %v287 = vlaneseq
        %v288 = vshrl.u32 %v287, 7
        %v289 = vsub.s32 0, %v288
        %v290 = vrot.slane %v285, %v289
        %vm292 = vcmask 261120
        %v294 = vsel %vm292, %v279, 0
        %v297 = vsel %vm292, %v280, 0
        %299 = vmatprep.subr.mxu0 0.0
        %300 = vmatpush1.msra.mxu0 %v281
        %301 = vmatprep.subr.mxu0 0.0
        %302 = vmatpush1.msra.mxu0 %v282
        %303 = vmatprep.subr.mxu0 0.0
        %304 = vmatpush1.msra.mxu0 %v283
        %305 = vmatprep.subr.mxu0 0.0
        %306 = vmatpush1.msra.mxu0 %v284
        %307 = vmatprep.subr.mxu0 0.0
        %308 = vmatpush1.msra.mxu0 0.0
        %309 = vmatprep.subr.mxu0 0.0
        %310 = vmatpush1.msra.mxu0 0.0
        %311 = vmatprep.subr.mxu0 0.0
        %312 = vmatpush1.msra.mxu0 0.0
        %313 = vmatprep.subr.mxu0 0.0
        %314 = vmatpush1.msra.mxu0 0.0
        %315 = vmatprep.subr.mxu0 0.0
        %316 = vmatpush1.msra.mxu0 0.0
        %317 = vmatprep.subr.mxu0 0.0
        %318 = vmatpush1.msra.mxu0 0.0
        %319 = vmatprep.subr.mxu0 0.0
        %320 = vmatpush1.msra.mxu0 0.0
        %321 = vmatprep.subr.mxu0 0.0
        %322 = vmatpush1.msra.mxu0 0.0
        %323 = vmatprep.subr.mxu0 0.0
        %324 = vmatpush1.msra.mxu0 0.0
        %325 = vmatprep.subr.mxu0 0.0
        %326 = vmatpush1.msra.mxu0 0.0
        %327 = vmatprep.subr.mxu0 0.0
        %328 = vmatpush1.msra.mxu0 0.0
        %329 = vmatprep.subr.mxu0 0.0
        %330 = vmatpush1.msra.mxu0 0.0
        %331 = vmatprep.subr.mxu0 0.0
        %332 = vmatpush1.msra.mxu0 0.0
        %333 = vmatprep.subr.mxu0 0.0
        %334 = vmatpush1.msra.mxu0 0.0
        %335 = vmatprep.subr.mxu0 0.0
        %336 = vmatpush1.msra.mxu0 0.0
        %337 = vmatprep.subr.mxu0 0.0
        %338 = vmatpush1.msra.mxu0 0.0
        %339 = vmatprep.subr.mxu0 0.0
        %340 = vmatpush1.msra.mxu0 0.0
        %341 = vmatprep.subr.mxu0 0.0
        %342 = vmatpush1.msra.mxu0 0.0
        %343 = vmatprep.subr.mxu0 0.0
        %344 = vmatpush1.msra.mxu0 0.0
        %345 = vmatprep.subr.mxu0 0.0
        %346 = vmatpush1.msra.mxu0 0.0
        %347 = vmatprep.subr.mxu0 0.0
        %348 = vmatpush1.msra.mxu0 0.0
        %349 = vmatprep.subr.mxu0 0.0
        %350 = vmatpush1.msra.mxu0 0.0
        %351 = vmatprep.subr.mxu0 0.0
        %352 = vmatpush1.msra.mxu0 0.0
        %353 = vmatprep.subr.mxu0 0.0
        %354 = vmatpush1.msra.mxu0 0.0
        %355 = vmatprep.subr.mxu0 0.0
        %356 = vmatpush1.msra.mxu0 0.0
        %357 = vmatprep.subr.mxu0 0.0
        %358 = vmatpush1.msra.mxu0 0.0
        %359 = vmatprep.subr.mxu0 0.0
        %360 = vmatpush1.msra.mxu0 0.0
        %361 = vmatprep.subr.mxu0 0.0
        %362 = vmatpush1.msra.mxu0 0.0
        %363 = vmatprep.mubr.f32.mxu0 0.0
        %364 = vmatmul.mubr.f32.gmra.mrb[0].mxu0 %v294
        %v365 = vpop.f32.mrb[0].mxu0
        %v366 = vadd.f32 %v290, %v365
        %v367 = vpop.f32.mrb[0].mxu0
        %368 = vmatprep.mubr.f32.mxu0 0.0
        %369 = vmatmul.mubr.f32.gmra.mrb[0].mxu0 %v297
        %v370 = vpop.f32.mrb[0].mxu0
        %v371 = vadd.f32 %v290, %v370
        %v372 = vpop.f32.mrb[0].mxu0
        %373 = vdwg.mxu0
        %374 = vst.msk [vmem:[%s277] sm:$0xff] %vm292, %v366
        %375 = vst.msk [vmem:[%s277 + $0x8] sm:$0xff] %vm292, %v371
        %s376 = smul.u32 2, %s24
        %p377 = scmp.lt.s32.totalorder %s22, 2
        %s378 = scalar_select %p377, %s22, 2
        %p379 = scmp.lt.s32.totalorder %s376, 1
        %s380 = scalar_select %p379, %s376, 1
        %p381 = scmp.lt.s32.totalorder %s23, 0
        %s382 = scalar_select %p381, %s23, 0
        %s383 = sadd.s32 %s382, %s380
        %s384 = smul.addr %s378, 2
        %s385 = sadd.s32 %s383, %s384
        %s386 = smul.addr %s385, 8
        %s387 = scalar_lea.vmem %s3, %s386
        // Predicated region
        $region37: #{_lambda_.3} parent=31 // pred_check
          %p388 = pneg %p140
        $region38: #{_lambda_.3} parent=31 // pred_check_branch
          %390 = sbr.rel (%p388) target = $region40
        $region39: #{_lambda_.3} parent=31 // pred_region
          %s391 = smul.u32 2, %s24
        $region40: #{_lambda_.3} parent=31 // pred_fallthru
          _
      $region32: #{_lambda_.3} parent=5 // pred_fallthru
        _
      %p392 = scmp.le.s32.totalorder 2, %s12
      // Predicated region
      $region41: #{_lambda_.3} parent=5 // pred_check
        %p393 = pneg %p392
      $region42: #{_lambda_.3} parent=5 // pred_check_branch
        %395 = sbr.rel (%p393) target = $region44
      $region43: #{_lambda_.3} parent=5 // pred_region
        %s396 = ssub.s32 %s12, 2
        // Predicated region
        $region45: #{_lambda_.3} parent=43 // pred_check
          %p397 = pneg %p146
        $region46: #{_lambda_.3} parent=43 // pred_check_branch
          %399 = sbr.rel (%p397) target = $region48
        $region47: #{_lambda_.3} parent=43 // pred_region
          %s400 = smul.u32 2, %s27
          %p401 = scmp.lt.s32.totalorder %s25, 2
          %s402 = scalar_select %p401, %s25, 2
          %p403 = scmp.lt.s32.totalorder %s400, 1
          %s404 = scalar_select %p403, %s400, 1
          %p405 = scmp.lt.s32.totalorder %s26, 0
          %s406 = scalar_select %p405, %s26, 0
          %s407 = sadd.s32 %s406, %s404
          %s408 = smul.addr %s402, 2
          %s409 = sadd.s32 %s407, %s408
          %s410 = smul.addr %s409, 8
          %s411 = scalar_lea.vmem %s3, %s410
        $region48: #{_lambda_.3} parent=43 // pred_fallthru
          _
      $region44: #{_lambda_.3} parent=5 // pred_fallthru
        _
    $region6: #{_lambda_.3} parent=1 // loop_footer
      %s16 = sadd.s32 1, %s12
    $region7: #{_lambda_.3} parent=1 // loop_footer_branch
      %11 = sbr.rel target = $region3
    $region8: #{_lambda_.3} parent=1 // loop_exit
      _
    %412 = vsyncpa [#allocation3], 1
    %s413 = scalar_lea.sflag [#allocation3], 1
    %414 = vsyncpa %s413, 1

// kernel: _lambda_.5
$region0: #{_lambda_.5}
  #allocation0 [shape = 'u32[]', space=smem, size = 0x4, offset = 0x4, fixed_abs, tag = 'smem constant byte address 0x4 - core index']
  #allocation1 [shape = 'u32[144,128]{1,0:T(1,128)}', space=vmem, size = 0x12000, scoped, tag = 'internal scratch']
  %s0 = inlined_call_operand.vmem [shape: f32[16,32], index: 0, kind: input, shape index: {}]
  %s1 = inlined_call_operand.vmem [shape: f32[32,32], index: 1, kind: input, shape index: {}]
  %s2 = inlined_call_operand.vmem [shape: f32[1,32], index: 2, kind: input, shape index: {}]
  %s3 = inlined_call_operand.hbm [shape: f32[16,32], index: 3, kind: output, shape index: {}]
  %s4 = sld [smem:[#allocation0]]
  $region22: #{_lambda_.5} parent=0
    _
  %s6 = ssub.s32 1, %s4
  %s7 = scalar_select 0, %s6, %s4
  $region1: #{_lambda_.5} parent=0
    #allocation2 [shape = 'u8[8192]{0}', space=vmem, size = 0x2000, scoped, tag = 'output window, operand 0, single buffered']
    #allocation3 [shape = 's32[1]{0}', space=sflag, size = 0x4, scoped, tag = 'scoped memory for _lambda_.5']
    %8 = vsyncpa [#allocation3], 0
    // Predicated region
    $region2: #{_lambda_.5} parent=1 // pred_check
      _
    $region3: #{_lambda_.5} parent=1 // pred_check_branch
      %10 = sbr.rel (0) target = $region5
    $region4: #{_lambda_.5} parent=1 // pred_region
      _
    $region5: #{_lambda_.5} parent=1 // pred_fallthru
      _
    // Predicated region
    $region6: #{_lambda_.5} parent=1 // pred_check
      _
    $region7: #{_lambda_.5} parent=1 // pred_check_branch
      %12 = sbr.rel (0) target = $region9
    $region8: #{_lambda_.5} parent=1 // pred_region
      _
    $region9: #{_lambda_.5} parent=1 // pred_fallthru
      _
    // Predicated region
    $region10: #{_lambda_.5} parent=1 // pred_check
      _
    $region11: #{_lambda_.5} parent=1 // pred_check_branch
      %14 = sbr.rel (0) target = $region13
    $region12: #{_lambda_.5} parent=1 // pred_region
      _
    $region13: #{_lambda_.5} parent=1 // pred_fallthru
      _
    %v15 = vld [vmem:[%s0] sm:$0xff]
    %v16 = vld [vmem:[%s0 + $0x8] sm:$0xff]
    %v17 = vld [vmem:[%s1] sm:$0xff]
    %v18 = vld [vmem:[%s1 + $0x8] sm:$0xff]
    %v19 = vld [vmem:[%s1 + $0x10] sm:$0xff]
    %v20 = vld [vmem:[%s1 + $0x18] sm:$0xff]
    %v21 = vld [vmem:[%s2] sm:$0x1]
    %v23 = vlaneseq
    %v24 = vshrl.u32 %v23, 7
    %v25 = vsub.s32 0, %v24
    %v26 = vrot.slane %v21, %v25
    %vm28 = vcmask 261120
    %v30 = vsel %vm28, %v15, 0
    %v33 = vsel %vm28, %v16, 0
    %35 = vmatprep.subr.mxu0 0.0
    %36 = vmatpush1.msra.mxu0 %v17
    %37 = vmatprep.subr.mxu0 0.0
    %38 = vmatpush1.msra.mxu0 %v18
    %39 = vmatprep.subr.mxu0 0.0
    %40 = vmatpush1.msra.mxu0 %v19
    %41 = vmatprep.subr.mxu0 0.0
    %42 = vmatpush1.msra.mxu0 %v20
    %43 = vmatprep.subr.mxu0 0.0
    %44 = vmatpush1.msra.mxu0 0.0
    %45 = vmatprep.subr.mxu0 0.0
    %46 = vmatpush1.msra.mxu0 0.0
    %47 = vmatprep.subr.mxu0 0.0
    %48 = vmatpush1.msra.mxu0 0.0
    %49 = vmatprep.subr.mxu0 0.0
    %50 = vmatpush1.msra.mxu0 0.0
    %51 = vmatprep.subr.mxu0 0.0
    %52 = vmatpush1.msra.mxu0 0.0
    %53 = vmatprep.subr.mxu0 0.0
    %54 = vmatpush1.msra.mxu0 0.0
    %55 = vmatprep.subr.mxu0 0.0
    %56 = vmatpush1.msra.mxu0 0.0
    %57 = vmatprep.subr.mxu0 0.0
    %58 = vmatpush1.msra.mxu0 0.0
    %59 = vmatprep.subr.mxu0 0.0
    %60 = vmatpush1.msra.mxu0 0.0
    %61 = vmatprep.subr.mxu0 0.0
    %62 = vmatpush1.msra.mxu0 0.0
    %63 = vmatprep.subr.mxu0 0.0
    %64 = vmatpush1.msra.mxu0 0.0
    %65 = vmatprep.subr.mxu0 0.0
    %66 = vmatpush1.msra.mxu0 0.0
    %67 = vmatprep.subr.mxu0 0.0
    %68 = vmatpush1.msra.mxu0 0.0
    %69 = vmatprep.subr.mxu0 0.0
    %70 = vmatpush1.msra.mxu0 0.0
    %71 = vmatprep.subr.mxu0 0.0
    %72 = vmatpush1.msra.mxu0 0.0
    %73 = vmatprep.subr.mxu0 0.0
    %74 = vmatpush1.msra.mxu0 0.0
    %75 = vmatprep.subr.mxu0 0.0
    %76 = vmatpush1.msra.mxu0 0.0
    %77 = vmatprep.subr.mxu0 0.0
    %78 = vmatpush1.msra.mxu0 0.0
    %79 = vmatprep.subr.mxu0 0.0
    %80 = vmatpush1.msra.mxu0 0.0
    %81 = vmatprep.subr.mxu0 0.0
    %82 = vmatpush1.msra.mxu0 0.0
    %83 = vmatprep.subr.mxu0 0.0
    %84 = vmatpush1.msra.mxu0 0.0
    %85 = vmatprep.subr.mxu0 0.0
    %86 = vmatpush1.msra.mxu0 0.0
    %87 = vmatprep.subr.mxu0 0.0
    %88 = vmatpush1.msra.mxu0 0.0
    %89 = vmatprep.subr.mxu0 0.0
    %90 = vmatpush1.msra.mxu0 0.0
    %91 = vmatprep.subr.mxu0 0.0
    %92 = vmatpush1.msra.mxu0 0.0
    %93 = vmatprep.subr.mxu0 0.0
    %94 = vmatpush1.msra.mxu0 0.0
    %95 = vmatprep.subr.mxu0 0.0
    %96 = vmatpush1.msra.mxu0 0.0
    %97 = vmatprep.subr.mxu0 0.0
    %98 = vmatpush1.msra.mxu0 0.0
    %99 = vmatprep.mubr.f32.mxu0 0.0
    %100 = vmatmul.mubr.f32.gmra.mrb[0].mxu0 %v30
    %v101 = vpop.f32.mrb[0].mxu0
    %v102 = vadd.f32 %v26, %v101
    %v103 = vpop.f32.mrb[0].mxu0
    %104 = vmatprep.mubr.f32.mxu0 0.0
    %105 = vmatmul.mubr.f32.gmra.mrb[0].mxu0 %v33
    %v106 = vpop.f32.mrb[0].mxu0
    %v107 = vadd.f32 %v26, %v106
    %v108 = vpop.f32.mrb[0].mxu0
    %109 = vdwg.mxu0
    %110 = vst.msk [vmem:[#allocation2] sm:$0xff] %vm28, %v102
    %111 = vst.msk [vmem:[#allocation2 + $0x8] sm:$0xff] %vm28, %v107
    // Predicated region
    $region14: #{_lambda_.5} parent=1 // pred_check
      _
    $region15: #{_lambda_.5} parent=1 // pred_check_branch
      %113 = sbr.rel (0) target = $region17
    $region16: #{_lambda_.5} parent=1 // pred_region
      %s115 = ssub.s32 256, 256
      %116 = vsyncadd [#allocation3], %s115
      %s117 = sshll.u32 [#allocation2], 4
      %s118 = int_to_ptr.vmem [resolvable:$true] %s117
      %123 = dma.vmem_to_hbm [thread:$0]  %s118, 256, %s3, [#allocation3], 128, 128, 8
    $region17: #{_lambda_.5} parent=1 // pred_fallthru
      _
    // Predicated region
    $region18: #{_lambda_.5} parent=1 // pred_check
      _
    $region19: #{_lambda_.5} parent=1 // pred_check_branch
      %125 = sbr.rel (0) target = $region21
    $region20: #{_lambda_.5} parent=1 // pred_region
      %126 = dma.done [#allocation3], 256
    $region21: #{_lambda_.5} parent=1 // pred_fallthru
      _
    %127 = vsyncpa [#allocation3], 1

// kernel: _lambda_.4
$region0: #{_lambda_.4}
  #allocation0 [shape = 'u32[]', space=smem, size = 0x4, offset = 0x4, fixed_abs, tag = 'smem constant byte address 0x4 - core index']
  #allocation1 [shape = 'u32[144,128]{1,0:T(1,128)}', space=vmem, size = 0x12000, scoped, tag = 'internal scratch']
  #allocation2 [shape = 'f32[4,8,128]{2,1,0:T(8,128)}', space=vmem, size = 0x4000, scoped, tag = 'scratch operand']
  #allocation3 [shape = 'f32[4,8,128]{2,1,0:T(8,128)}', space=vmem, size = 0x4000, scoped, tag = 'scratch operand']
  #allocation4 [shape = 'f32[8,32]{1,0:T(8,128)}', space=vmem, size = 0x1000, scoped, tag = 'scratch operand']
  %s0 = inlined_call_operand.vmem [shape: f32[2,8,32], index: 0, kind: input, shape index: {}]
  %s1 = inlined_call_operand.vmem [shape: f32[2,8,32], index: 1, kind: input, shape index: {}]
  %s2 = inlined_call_operand.vmem [shape: f32[2,8,32], index: 2, kind: input, shape index: {}]
  %s3 = inlined_call_operand.vmem [shape: f32[2,1,8], index: 3, kind: input, shape index: {}]
  %s4 = inlined_call_operand.vmem [shape: f32[2,8,32], index: 4, kind: output, shape index: {}]
  %s5 = sld [smem:[#allocation0]]
  $region57: #{_lambda_.4} parent=0
    _
  %s7 = ssub.s32 1, %s5
  %s8 = scalar_select 0, %s7, %s5
  loop: start=0, step=1, limit=4
  $region2: #{_lambda_.4} parent=0 // loop_pre_header
    _
  $region3: #{_lambda_.4} parent=0 // loop_header
    %s10 = sphi 0, %s14
    %p11 = scmp.ge.s32.totalorder %s10, 4
    %s17 = sphi 0, %s43
    %s18 = sphi 0, %s39
    %s19 = sphi 0, %s35
    %s20 = sphi 0, %s31
    %s21 = sphi 0, %s17
    %s22 = sphi 0, %s18
    %s23 = sphi 0, %s19
    %s24 = sphi 0, %s20
    %s25 = sphi 0, %s21
    %s26 = sphi 0, %s22
    %s27 = sphi 0, %s23
    %s28 = sphi 0, %s24
    %s50 = sphi 0, %s52
    %s53 = sphi 0, %s50
    %s54 = sphi 0, %s53
    %s70 = sphi 0, %s54
    %s80 = sphi 0, %s82
    %s83 = sphi 0, %s80
    %s84 = sphi 0, %s83
    %s100 = sphi 0, %s84
    %s110 = sphi 0, %s112
    %s113 = sphi 0, %s110
    %s114 = sphi 0, %s113
    %s130 = sphi 0, %s114
    %s138 = sphi 0, %s140
    %s141 = sphi 0, %s138
    %s142 = sphi 0, %s141
    %s158 = sphi 0, %s142
    %s168 = sphi 0, %s170
    %s171 = sphi 0, %s168
    %s172 = sphi 0, %s171
    %s188 = sphi 0, %s172
  $region4: #{_lambda_.4} parent=0 // loop_header_branch
    %13 = sbr.rel (%p11) target = $region8
  $region5: #{_lambda_.4} parent=0 // loop_body
    %s15 = ssub.s32 %s10, 1
    %s16 = ssub.s32 %s10, 2
    %s29 = sadd.s32 1, %s20
    %p30 = scmp.ge.s32.totalorder %s29, 1
    %s31 = scalar_select %p30, 0, %s29
    %s32 = sadd.s32 1, %s19
    %s33 = scalar_select %p30, %s32, %s19
    %p34 = scmp.ge.s32.totalorder %s33, 1
    %s35 = scalar_select %p34, 0, %s33
    %s36 = sadd.s32 1, %s18
    %s37 = scalar_select %p34, %s36, %s18
    %p38 = scmp.ge.s32.totalorder %s37, 1
    %s39 = scalar_select %p38, 0, %s37
    %s40 = sadd.s32 1, %s17
    %s41 = scalar_select %p38, %s40, %s17
    %p42 = scmp.ge.s32.totalorder %s41, 2
    %s43 = scalar_select %p42, 0, %s41
    %s44 = ssub.s32 %s17, %s43
    %s45 = ssub.s32 %s19, %s35
    %s46 = sor.u32 %s44, %s45
    %s47 = ssub.s32 %s18, %s39
    %s48 = sor.u32 %s46, %s47
    %p49 = scmp.eq.s32.totalorder %s48, 0
    %s51 = sadd.s32 %s50, 1
    %s52 = scalar_select %p49, %s50, %s51
    %p55 = pneg %p49
    %p56 = scmp.eq.s32.totalorder %s10, 1
    %p57 = por %p55, %p56
    %p58 = scmp.ne.s32.totalorder %s50, %s53
    %p59 = scmp.eq.s32.totalorder %s10, 0
    %p60 = por %p58, %p59
    %p61 = scmp.ne.s32.totalorder %s50, %s53
    %p62 = scmp.eq.s32.totalorder %s15, 1
    %p63 = por %p61, %p62
    %p64 = scmp.ne.s32.totalorder %s53, %s54
    %p65 = scmp.eq.s32.totalorder %s15, 0
    %p66 = por %p64, %p65
    %p67 = scmp.ne.s32.totalorder %s53, %s54
    %p68 = scmp.eq.s32.totalorder %s16, 1
    %p69 = por %p67, %p68
    %p71 = scmp.ne.s32.totalorder %s54, %s70
    %p72 = scmp.eq.s32.totalorder %s16, 0
    %p73 = por %p71, %p72
    %s74 = ssub.s32 %s17, %s43
    %s75 = ssub.s32 %s20, %s31
    %s76 = sor.u32 %s74, %s75
    %s77 = ssub.s32 %s18, %s39
    %s78 = sor.u32 %s76, %s77
    %p79 = scmp.eq.s32.totalorder %s78, 0
    %s81 = sadd.s32 %s80, 1
    %s82 = scalar_select %p79, %s80, %s81
    %p85 = pneg %p79
    %p86 = scmp.eq.s32.totalorder %s10, 1
    %p87 = por %p85, %p86
    %p88 = scmp.ne.s32.totalorder %s80, %s83
    %p89 = scmp.eq.s32.totalorder %s10, 0
    %p90 = por %p88, %p89
    %p91 = scmp.ne.s32.totalorder %s80, %s83
    %p92 = scmp.eq.s32.totalorder %s15, 1
    %p93 = por %p91, %p92
    %p94 = scmp.ne.s32.totalorder %s83, %s84
    %p95 = scmp.eq.s32.totalorder %s15, 0
    %p96 = por %p94, %p95
    %p97 = scmp.ne.s32.totalorder %s83, %s84
    %p98 = scmp.eq.s32.totalorder %s16, 1
    %p99 = por %p97, %p98
    %p101 = scmp.ne.s32.totalorder %s84, %s100
    %p102 = scmp.eq.s32.totalorder %s16, 0
    %p103 = por %p101, %p102
    %s104 = ssub.s32 %s17, %s43
    %s105 = ssub.s32 %s20, %s31
    %s106 = sor.u32 %s104, %s105
    %s107 = ssub.s32 %s18, %s39
    %s108 = sor.u32 %s106, %s107
    %p109 = scmp.eq.s32.totalorder %s108, 0
    %s111 = sadd.s32 %s110, 1
    %s112 = scalar_select %p109, %s110, %s111
    %p115 = pneg %p109
    %p116 = scmp.eq.s32.totalorder %s10, 1
    %p117 = por %p115, %p116
    %p118 = scmp.ne.s32.totalorder %s110, %s113
    %p119 = scmp.eq.s32.totalorder %s10, 0
    %p120 = por %p118, %p119
    %p121 = scmp.ne.s32.totalorder %s110, %s113
    %p122 = scmp.eq.s32.totalorder %s15, 1
    %p123 = por %p121, %p122
    %p124 = scmp.ne.s32.totalorder %s113, %s114
    %p125 = scmp.eq.s32.totalorder %s15, 0
    %p126 = por %p124, %p125
    %p127 = scmp.ne.s32.totalorder %s113, %s114
    %p128 = scmp.eq.s32.totalorder %s16, 1
    %p129 = por %p127, %p128
    %p131 = scmp.ne.s32.totalorder %s114, %s130
    %p132 = scmp.eq.s32.totalorder %s16, 0
    %p133 = por %p131, %p132
    %s134 = ssub.s32 %s17, %s43
    %s135 = ssub.s32 %s20, %s31
    %s136 = sor.u32 %s134, %s135
    %p137 = scmp.eq.s32.totalorder %s136, 0
    %s139 = sadd.s32 %s138, 1
    %s140 = scalar_select %p137, %s138, %s139
    %p143 = pneg %p137
    %p144 = scmp.eq.s32.totalorder %s10, 1
    %p145 = por %p143, %p144
    %p146 = scmp.ne.s32.totalorder %s138, %s141
    %p147 = scmp.eq.s32.totalorder %s10, 0
    %p148 = por %p146, %p147
    %p149 = scmp.ne.s32.totalorder %s138, %s141
    %p150 = scmp.eq.s32.totalorder %s15, 1
    %p151 = por %p149, %p150
    %p152 = scmp.ne.s32.totalorder %s141, %s142
    %p153 = scmp.eq.s32.totalorder %s15, 0
    %p154 = por %p152, %p153
    %p155 = scmp.ne.s32.totalorder %s141, %s142
    %p156 = scmp.eq.s32.totalorder %s16, 1
    %p157 = por %p155, %p156
    %p159 = scmp.ne.s32.totalorder %s142, %s158
    %p160 = scmp.eq.s32.totalorder %s16, 0
    %p161 = por %p159, %p160
    %s162 = ssub.s32 %s17, %s43
    %s163 = ssub.s32 %s19, %s35
    %s164 = sor.u32 %s162, %s163
    %s165 = ssub.s32 %s18, %s39
    %s166 = sor.u32 %s164, %s165
    %p167 = scmp.eq.s32.totalorder %s166, 0
    %s169 = sadd.s32 %s168, 1
    %s170 = scalar_select %p167, %s168, %s169
    %p173 = pneg %p167
    %p174 = scmp.eq.s32.totalorder %s10, 1
    %p175 = por %p173, %p174
    %p176 = scmp.ne.s32.totalorder %s168, %s171
    %p177 = scmp.eq.s32.totalorder %s10, 0
    %p178 = por %p176, %p177
    %p179 = scmp.ne.s32.totalorder %s168, %s171
    %p180 = scmp.eq.s32.totalorder %s15, 1
    %p181 = por %p179, %p180
    %p182 = scmp.ne.s32.totalorder %s171, %s172
    %p183 = scmp.eq.s32.totalorder %s15, 0
    %p184 = por %p182, %p183
    %p185 = scmp.ne.s32.totalorder %s171, %s172
    %p186 = scmp.eq.s32.totalorder %s16, 1
    %p187 = por %p185, %p186
    %p189 = scmp.ne.s32.totalorder %s172, %s188
    %p190 = scmp.eq.s32.totalorder %s16, 0
    %p191 = por %p189, %p190
    %p192 = scmp.le.s32.totalorder 1, %s10
    %p193 = scmp.lt.s32.totalorder %s10, 3
    %p194 = pnand %p192, %p193
    %p195 = pneg %p194
    // Predicated region
    $region9: #{_lambda_.4} parent=5 // pred_check
      _
    $region10: #{_lambda_.4} parent=5 // pred_check_branch
      %197 = sbr.rel (%p194) target = $region12
    $region11: #{_lambda_.4} parent=5 // pred_region
      %s198 = ssub.s32 %s10, 1
    $region12: #{_lambda_.4} parent=5 // pred_fallthru
      _
    %p199 = scmp.lt.s32.totalorder %s10, 2
    // Predicated region
    $region13: #{_lambda_.4} parent=5 // pred_check
      %p200 = pneg %p199
    $region14: #{_lambda_.4} parent=5 // pred_check_branch
      %202 = sbr.rel (%p200) target = $region16
    $region15: #{_lambda_.4} parent=5 // pred_region
      // Predicated region
      $region17: #{_lambda_.4} parent=15 // pred_check
        %p203 = pneg %p60
      $region18: #{_lambda_.4} parent=15 // pred_check_branch
        %205 = sbr.rel (%p203) target = $region20
      $region19: #{_lambda_.4} parent=15 // pred_region
        %p206 = scmp.lt.s32.totalorder %s17, 1
        %s207 = scalar_select %p206, %s17, 1
        %p208 = scmp.lt.s32.totalorder %s19, 0
        %s209 = scalar_select %p208, %s19, 0
        %p210 = scmp.lt.s32.totalorder %s18, 0
        %s211 = scalar_select %p210, %s18, 0
        %s212 = sadd.s32 %s211, %s209
        %s213 = sadd.s32 %s212, %s207
        %s214 = smul.addr %s213, 8
        %s215 = scalar_lea.vmem %s0, %s214
      $region20: #{_lambda_.4} parent=15 // pred_fallthru
        _
      // Predicated region
      $region21: #{_lambda_.4} parent=15 // pred_check
        %p216 = pneg %p90
      $region22: #{_lambda_.4} parent=15 // pred_check_branch
        %218 = sbr.rel (%p216) target = $region24
      $region23: #{_lambda_.4} parent=15 // pred_region
        %p219 = scmp.lt.s32.totalorder %s17, 1
        %s220 = scalar_select %p219, %s17, 1
        %p221 = scmp.lt.s32.totalorder %s20, 0
        %s222 = scalar_select %p221, %s20, 0
        %p223 = scmp.lt.s32.totalorder %s18, 0
        %s224 = scalar_select %p223, %s18, 0
        %s225 = sadd.s32 %s224, %s222
        %s226 = sadd.s32 %s225, %s220
        %s227 = smul.addr %s226, 8
        %s228 = scalar_lea.vmem %s1, %s227
      $region24: #{_lambda_.4} parent=15 // pred_fallthru
        _
      // Predicated region
      $region25: #{_lambda_.4} parent=15 // pred_check
        %p229 = pneg %p120
      $region26: #{_lambda_.4} parent=15 // pred_check_branch
        %231 = sbr.rel (%p229) target = $region28
      $region27: #{_lambda_.4} parent=15 // pred_region
        %p232 = scmp.lt.s32.totalorder %s17, 1
        %s233 = scalar_select %p232, %s17, 1
        %p234 = scmp.lt.s32.totalorder %s20, 0
        %s235 = scalar_select %p234, %s20, 0
        %p236 = scmp.lt.s32.totalorder %s18, 0
        %s237 = scalar_select %p236, %s18, 0
        %s238 = sadd.s32 %s237, %s235
        %s239 = sadd.s32 %s238, %s233
        %s240 = smul.addr %s239, 8
        %s241 = scalar_lea.vmem %s2, %s240
      $region28: #{_lambda_.4} parent=15 // pred_fallthru
        _
      // Predicated region
      $region29: #{_lambda_.4} parent=15 // pred_check
        %p242 = pneg %p148
      $region30: #{_lambda_.4} parent=15 // pred_check_branch
        %244 = sbr.rel (%p242) target = $region32
      $region31: #{_lambda_.4} parent=15 // pred_region
        %p245 = scmp.lt.s32.totalorder %s17, 1
        %s246 = scalar_select %p245, %s17, 1
        %p247 = scmp.lt.s32.totalorder %s20, 0
        %s248 = scalar_select %p247, %s20, 0
        %s249 = sadd.s32 %s248, %s246
        %s250 = scalar_lea.vmem %s3, %s249
      $region32: #{_lambda_.4} parent=15 // pred_fallthru
        _
    $region16: #{_lambda_.4} parent=5 // pred_fallthru
      _
    %p251 = scmp.le.s32.totalorder 1, %s10
    %p252 = scmp.lt.s32.totalorder %s10, 3
    %p253 = pnand %p251, %p252
    %p254 = pneg %p253
    // Predicated region
    $region33: #{_lambda_.4} parent=5 // pred_check
      _
    $region34: #{_lambda_.4} parent=5 // pred_check_branch
      %256 = sbr.rel (%p253) target = $region36
    $region35: #{_lambda_.4} parent=5 // pred_region
      %s257 = ssub.s32 %s10, 1
      %p258 = scmp.lt.s32.totalorder %s21, 1
      %s259 = scalar_select %p258, %s21, 1
      %p260 = scmp.lt.s32.totalorder %s23, 0
      %s261 = scalar_select %p260, %s23, 0
      %p262 = scmp.lt.s32.totalorder %s22, 0
      %s263 = scalar_select %p262, %s22, 0
      %s264 = sadd.s32 %s263, %s261
      %s265 = sadd.s32 %s264, %s259
      %s266 = smul.addr %s265, 8
      %s267 = scalar_lea.vmem %s0, %s266
      %p268 = pneg %p66
      %p269 = pneg %p63
      %p270 = scmp.lt.s32.totalorder %s21, 1
      %s271 = scalar_select %p270, %s21, 1
      %p272 = scmp.lt.s32.totalorder %s24, 0
      %s273 = scalar_select %p272, %s24, 0
      %p274 = scmp.lt.s32.totalorder %s22, 0
      %s275 = scalar_select %p274, %s22, 0
      %s276 = sadd.s32 %s275, %s273
      %s277 = sadd.s32 %s276, %s271
      %s278 = smul.addr %s277, 8
      %s279 = scalar_lea.vmem %s1, %s278
      %p280 = pneg %p96
      %p281 = pneg %p93
      %p282 = scmp.lt.s32.totalorder %s21, 1
      %s283 = scalar_select %p282, %s21, 1
      %p284 = scmp.lt.s32.totalorder %s24, 0
      %s285 = scalar_select %p284, %s24, 0
      %p286 = scmp.lt.s32.totalorder %s22, 0
      %s287 = scalar_select %p286, %s22, 0
      %s288 = sadd.s32 %s287, %s285
      %s289 = sadd.s32 %s288, %s283
      %s290 = smul.addr %s289, 8
      %s291 = scalar_lea.vmem %s2, %s290
      %p292 = pneg %p126
      %p293 = pneg %p123
      %p294 = scmp.lt.s32.totalorder %s21, 1
      %s295 = scalar_select %p294, %s21, 1
      %p296 = scmp.lt.s32.totalorder %s24, 0
      %s297 = scalar_select %p296, %s24, 0
      %s298 = sadd.s32 %s297, %s295
      %s299 = scalar_lea.vmem %s3, %s298
      %p300 = pneg %p154
      %p301 = pneg %p151
      %p302 = pneg %p184
      %p303 = pneg %p181
      %p304 = scmp.lt.s32.totalorder %s21, 1
      %s305 = scalar_select %p304, %s21, 1
      %p306 = scmp.lt.s32.totalorder %s23, 0
      %s307 = scalar_select %p306, %s23, 0
      %p308 = scmp.lt.s32.totalorder %s22, 0
      %s309 = scalar_select %p308, %s22, 0
      %s310 = sadd.s32 %s309, %s307
      %s311 = sadd.s32 %s310, %s305
      %s312 = smul.addr %s311, 8
      %s313 = scalar_lea.vmem %s4, %s312
      %p314 = scmp.lt.s32.totalorder %s21, 1
      %s315 = scalar_select %p314, %s21, 1
      %p316 = scmp.lt.s32.totalorder %s23, 0
      %s317 = scalar_select %p316, %s23, 0
      %p318 = scmp.lt.s32.totalorder %s22, 0
      %s319 = scalar_select %p318, %s22, 0
      %s320 = sadd.s32 %s319, %s317
      %s321 = sadd.s32 %s320, %s315
      %s322 = smul.addr %s321, 8
      %s323 = scalar_lea.vmem %s0, %s322
      %p324 = scmp.lt.s32.totalorder %s21, 1
      %s325 = scalar_select %p324, %s21, 1
      %p326 = scmp.lt.s32.totalorder %s24, 0
      %s327 = scalar_select %p326, %s24, 0
      %p328 = scmp.lt.s32.totalorder %s22, 0
      %s329 = scalar_select %p328, %s22, 0
      %s330 = sadd.s32 %s329, %s327
      %s331 = sadd.s32 %s330, %s325
      %s332 = smul.addr %s331, 8
      %s333 = scalar_lea.vmem %s1, %s332
      %p334 = scmp.lt.s32.totalorder %s21, 1
      %s335 = scalar_select %p334, %s21, 1
      %p336 = scmp.lt.s32.totalorder %s24, 0
      %s337 = scalar_select %p336, %s24, 0
      %p338 = scmp.lt.s32.totalorder %s22, 0
      %s339 = scalar_select %p338, %s22, 0
      %s340 = sadd.s32 %s339, %s337
      %s341 = sadd.s32 %s340, %s335
      %s342 = smul.addr %s341, 8
      %s343 = scalar_lea.vmem %s2, %s342
      %p344 = scmp.lt.s32.totalorder %s21, 1
      %s345 = scalar_select %p344, %s21, 1
      %p346 = scmp.lt.s32.totalorder %s24, 0
      %s347 = scalar_select %p346, %s24, 0
      %s348 = sadd.s32 %s347, %s345
      %s349 = scalar_lea.vmem %s3, %s348
      %p350 = scmp.lt.s32.totalorder %s21, 1
      %s351 = scalar_select %p350, %s21, 1
      %p352 = scmp.lt.s32.totalorder %s23, 0
      %s353 = scalar_select %p352, %s23, 0
      %p354 = scmp.lt.s32.totalorder %s22, 0
      %s355 = scalar_select %p354, %s22, 0
      %s356 = sadd.s32 %s355, %s353
      %s357 = sadd.s32 %s356, %s351
      %s358 = smul.addr %s357, 8
      %s359 = scalar_lea.vmem %s4, %s358
      %p360 = scmp.eq.s32.totalorder %s24, 0
      // Predicated region
      $region37: #{_lambda_.4} parent=35 // pred_check
        %p361 = pneg %p360
      $region38: #{_lambda_.4} parent=35 // pred_check_branch
        %363 = sbr.rel (%p361) target = $region40
      $region39: #{_lambda_.4} parent=35 // pred_region
        %364 = vst [vmem:[#allocation2] sm:$0xff] -inf
        %365 = vst [vmem:[#allocation2 + $0x8] sm:$0xff] -inf
        %366 = vst [vmem:[#allocation2 + $0x10] sm:$0xff] -inf
        %367 = vst [vmem:[#allocation2 + $0x18] sm:$0xff] -inf
        %368 = vst [vmem:[#allocation3] sm:$0xff] 0.0
        %369 = vst [vmem:[#allocation3 + $0x8] sm:$0xff] 0.0
        %370 = vst [vmem:[#allocation3 + $0x10] sm:$0xff] 0.0
        %371 = vst [vmem:[#allocation3 + $0x18] sm:$0xff] 0.0
        %vm372 = vcmask 261120
        %373 = vst.msk [vmem:[#allocation4] sm:$0xff] %vm372, 0.0
      $region40: #{_lambda_.4} parent=35 // pred_fallthru
        _
      %v374 = vld [vmem:[%s323] sm:$0xff]
      %v375 = vld [vmem:[%s333] sm:$0xff]
      %v376 = vld [vmem:[%s343] sm:$0xff]
      %v377 = vld [vmem:[%s349] sm:$0x1]
      %v379 = vlaneseq
      %v380 = vshrl.u32 %v379, 7
      %v381 = vsub.s32 0, %v380
      %v382 = vrot.slane %v377, %v381
      %vm384 = vcmask 64512
      %v386 = vsel %vm384, %v374, 0
      %v389 = vsel %vm384, %v375, 0
      %391 = vmatprep.subr.mxu0 0.0
      %392 = vmatpush1.xpose.msra.mxu0 %v389
      %393 = vmatprep.subr.mxu0 0.0
      %394 = vmatpush1.xpose.msra.mxu0 0.0
      %395 = vmatprep.subr.mxu0 0.0
      %396 = vmatpush1.xpose.msra.mxu0 0.0
      %397 = vmatprep.subr.mxu0 0.0
      %398 = vmatpush1.xpose.msra.mxu0 0.0
      %399 = vmatprep.subr.mxu0 0.0
      %400 = vmatpush1.xpose.msra.mxu0 0.0
      %401 = vmatprep.subr.mxu0 0.0
      %402 = vmatpush1.xpose.msra.mxu0 0.0
      %403 = vmatprep.subr.mxu0 0.0
      %404 = vmatpush1.xpose.msra.mxu0 0.0
      %405 = vmatprep.subr.mxu0 0.0
      %406 = vmatpush1.xpose.msra.mxu0 0.0
      %407 = vmatprep.subr.mxu0 0.0
      %408 = vmatpush1.xpose.msra.mxu0 0.0
      %409 = vmatprep.subr.mxu0 0.0
      %410 = vmatpush1.xpose.msra.mxu0 0.0
      %411 = vmatprep.subr.mxu0 0.0
      %412 = vmatpush1.xpose.msra.mxu0 0.0
      %413 = vmatprep.subr.mxu0 0.0
      %414 = vmatpush1.xpose.msra.mxu0 0.0
      %415 = vmatprep.subr.mxu0 0.0
      %416 = vmatpush1.xpose.msra.mxu0 0.0
      %417 = vmatprep.subr.mxu0 0.0
      %418 = vmatpush1.xpose.msra.mxu0 0.0
      %419 = vmatprep.subr.mxu0 0.0
      %420 = vmatpush1.xpose.msra.mxu0 0.0
      %421 = vmatprep.subr.mxu0 0.0
      %422 = vmatpush1.xpose.msra.mxu0 0.0
      %423 = vmatprep.subr.mxu0 0.0
      %424 = vmatpush1.xpose.msra.mxu0 0.0
      %425 = vmatprep.subr.mxu0 0.0
      %426 = vmatpush1.xpose.msra.mxu0 0.0
      %427 = vmatprep.subr.mxu0 0.0
      %428 = vmatpush1.xpose.msra.mxu0 0.0
      %429 = vmatprep.subr.mxu0 0.0
      %430 = vmatpush1.xpose.msra.mxu0 0.0
      %431 = vmatprep.subr.mxu0 0.0
      %432 = vmatpush1.xpose.msra.mxu0 0.0
      %433 = vmatprep.subr.mxu0 0.0
      %434 = vmatpush1.xpose.msra.mxu0 0.0
      %435 = vmatprep.subr.mxu0 0.0
      %436 = vmatpush1.xpose.msra.mxu0 0.0
      %437 = vmatprep.subr.mxu0 0.0
      %438 = vmatpush1.xpose.msra.mxu0 0.0
      %439 = vmatprep.subr.mxu0 0.0
      %440 = vmatpush1.xpose.msra.mxu0 0.0
      %441 = vmatprep.subr.mxu0 0.0
      %442 = vmatpush1.xpose.msra.mxu0 0.0
      %443 = vmatprep.subr.mxu0 0.0
      %444 = vmatpush1.xpose.msra.mxu0 0.0
      %445 = vmatprep.subr.mxu0 0.0
      %446 = vmatpush1.xpose.msra.mxu0 0.0
      %447 = vmatprep.subr.mxu0 0.0
      %448 = vmatpush1.xpose.msra.mxu0 0.0
      %449 = vmatprep.subr.mxu0 0.0
      %450 = vmatpush1.xpose.msra.mxu0 0.0
      %451 = vmatprep.subr.mxu0 0.0
      %452 = vmatpush1.xpose.msra.mxu0 0.0
      %453 = vmatprep.subr.mxu0 0.0
      %454 = vmatpush1.xpose.msra.mxu0 0.0
      %455 = vmatprep.mubr.f32.mxu0 0.0
      %456 = vmatmul.mubr.f32.gmra.mrb[0].mxu0 %v386
      %v457 = vpop.f32.mrb[0].mxu0
      %v458 = vadd.f32 %v382, %v457
      %v459 = vpop.f32.mrb[0].mxu0
      %460 = vdwg.mxu0
      %v461 = vld [vmem:[#allocation2] sm:$0xff]
      %v462 = vld [vmem:[#allocation3] sm:$0xff]
      %v463 = vsel %vm384, %v458, -inf
      %464 = vmax.xlane.f32.xlu0 %v463
      %v465 = vpop.xlane.xlu0 %464
      %v466 = vmax.f32 %v461, %v465
      %v467 = vsub.f32 %v461, %v466
      %v468 = vmul.f32 %v467, 1.442695
      %v469 = vpow.pop %v468
      %471 = vset.pattern.permute.xlu0 0
      %472 = vperm.xlu0 %471, %v466
      %v473 = vpop.permute.xlu0 %472
      %v475 = vsub.f32 %v458, %v473
      %v476 = vmul.f32 %v475, 1.442695
      %v477 = vpow.pop %v476
      %v478 = vmul.f32 %v469, %v462
      %v479 = vsel %vm384, %v477, 0.0
      %480 = vadd.xlane.f32.xlu0 %v479
      %v481 = vpop.xlane.xlu0 %480
      %v482 = vadd.f32 %v478, %v481
      %v484 = vsel %vm384, %v477, 0
      %486 = vmatprep.subr.mxu0 0.0
      %487 = vmatpush1.msra.mxu0 %v376
      %488 = vmatprep.subr.mxu0 0.0
      %489 = vmatpush1.msra.mxu0 0.0
      %490 = vmatprep.subr.mxu0 0.0
      %491 = vmatpush1.msra.mxu0 0.0
      %492 = vmatprep.subr.mxu0 0.0
      %493 = vmatpush1.msra.mxu0 0.0
      %494 = vmatprep.subr.mxu0 0.0
      %495 = vmatpush1.msra.mxu0 0.0
      %496 = vmatprep.subr.mxu0 0.0
      %497 = vmatpush1.msra.mxu0 0.0
      %498 = vmatprep.subr.mxu0 0.0
      %499 = vmatpush1.msra.mxu0 0.0
      %500 = vmatprep.subr.mxu0 0.0
      %501 = vmatpush1.msra.mxu0 0.0
      %502 = vmatprep.subr.mxu0 0.0
      %503 = vmatpush1.msra.mxu0 0.0
      %504 = vmatprep.subr.mxu0 0.0
      %505 = vmatpush1.msra.mxu0 0.0
      %506 = vmatprep.subr.mxu0 0.0
      %507 = vmatpush1.msra.mxu0 0.0
      %508 = vmatprep.subr.mxu0 0.0
      %509 = vmatpush1.msra.mxu0 0.0
      %510 = vmatprep.subr.mxu0 0.0
      %511 = vmatpush1.msra.mxu0 0.0
      %512 = vmatprep.subr.mxu0 0.0
      %513 = vmatpush1.msra.mxu0 0.0
      %514 = vmatprep.subr.mxu0 0.0
      %515 = vmatpush1.msra.mxu0 0.0
      %516 = vmatprep.subr.mxu0 0.0
      %517 = vmatpush1.msra.mxu0 0.0
      %518 = vmatprep.subr.mxu0 0.0
      %519 = vmatpush1.msra.mxu0 0.0
      %520 = vmatprep.subr.mxu0 0.0
      %521 = vmatpush1.msra.mxu0 0.0
      %522 = vmatprep.subr.mxu0 0.0
      %523 = vmatpush1.msra.mxu0 0.0
      %524 = vmatprep.subr.mxu0 0.0
      %525 = vmatpush1.msra.mxu0 0.0
      %526 = vmatprep.subr.mxu0 0.0
      %527 = vmatpush1.msra.mxu0 0.0
      %528 = vmatprep.subr.mxu0 0.0
      %529 = vmatpush1.msra.mxu0 0.0
      %530 = vmatprep.subr.mxu0 0.0
      %531 = vmatpush1.msra.mxu0 0.0
      %532 = vmatprep.subr.mxu0 0.0
      %533 = vmatpush1.msra.mxu0 0.0
      %534 = vmatprep.subr.mxu0 0.0
      %535 = vmatpush1.msra.mxu0 0.0
      %536 = vmatprep.subr.mxu0 0.0
      %537 = vmatpush1.msra.mxu0 0.0
      %538 = vmatprep.subr.mxu0 0.0
      %539 = vmatpush1.msra.mxu0 0.0
      %540 = vmatprep.subr.mxu0 0.0
      %541 = vmatpush1.msra.mxu0 0.0
      %542 = vmatprep.subr.mxu0 0.0
      %543 = vmatpush1.msra.mxu0 0.0
      %544 = vmatprep.subr.mxu0 0.0
      %545 = vmatpush1.msra.mxu0 0.0
      %546 = vmatprep.subr.mxu0 0.0
      %547 = vmatpush1.msra.mxu0 0.0
      %548 = vmatprep.subr.mxu0 0.0
      %549 = vmatpush1.msra.mxu0 0.0
      %550 = vmatprep.mubr.f32.mxu0 0.0
      %551 = vmatmul.mubr.f32.gmra.mrb[0].mxu0 %v484
      %v552 = vpop.f32.mrb[0].mxu0
      %v553 = vadd.f32 0.0, %v552
      %v554 = vpop.f32.mrb[0].mxu0
      %555 = vdwg.mxu0
      %v556 = vld [vmem:[#allocation4] sm:$0xff]
      %558 = vset.pattern.permute.xlu0 0
      %559 = vperm.xlu0 %558, %v469
      %v560 = vpop.permute.xlu0 %559
      %v562 = vmul.f32 %v560, %v556
      %v563 = vadd.f32 %v562, %v553
      %564 = vst.msk [vmem:[#allocation4] sm:$0xff] %vm384, %v563
      %565 = vst [vmem:[#allocation2] sm:$0xff] %v466
      %566 = vst [vmem:[#allocation3] sm:$0xff] %v482
      %567 = vrot.lane.b32.xlu0 %v374, 120
      %v568 = vpop.permute.xlu0 %567
      %569 = vrot.lane.b32.xlu0 %v375, 120
      %v570 = vpop.permute.xlu0 %569
      %v571 = vsel %vm384, %v568, 0
      %v573 = vsel %vm384, %v570, 0
      %575 = vmatprep.subr.mxu0 0.0
      %576 = vmatpush1.xpose.msra.mxu0 %v573
      %577 = vmatprep.subr.mxu0 0.0
      %578 = vmatpush1.xpose.msra.mxu0 0.0
      %579 = vmatprep.subr.mxu0 0.0
      %580 = vmatpush1.xpose.msra.mxu0 0.0
      %581 = vmatprep.subr.mxu0 0.0
      %582 = vmatpush1.xpose.msra.mxu0 0.0
      %583 = vmatprep.subr.mxu0 0.0
      %584 = vmatpush1.xpose.msra.mxu0 0.0
      %585 = vmatprep.subr.mxu0 0.0
      %586 = vmatpush1.xpose.msra.mxu0 0.0
      %587 = vmatprep.subr.mxu0 0.0
      %588 = vmatpush1.xpose.msra.mxu0 0.0
      %589 = vmatprep.subr.mxu0 0.0
      %590 = vmatpush1.xpose.msra.mxu0 0.0
      %591 = vmatprep.subr.mxu0 0.0
      %592 = vmatpush1.xpose.msra.mxu0 0.0
      %593 = vmatprep.subr.mxu0 0.0
      %594 = vmatpush1.xpose.msra.mxu0 0.0
      %595 = vmatprep.subr.mxu0 0.0
      %596 = vmatpush1.xpose.msra.mxu0 0.0
      %597 = vmatprep.subr.mxu0 0.0
      %598 = vmatpush1.xpose.msra.mxu0 0.0
      %599 = vmatprep.subr.mxu0 0.0
      %600 = vmatpush1.xpose.msra.mxu0 0.0
      %601 = vmatprep.subr.mxu0 0.0
      %602 = vmatpush1.xpose.msra.mxu0 0.0
      %603 = vmatprep.subr.mxu0 0.0
      %604 = vmatpush1.xpose.msra.mxu0 0.0
      %605 = vmatprep.subr.mxu0 0.0
      %606 = vmatpush1.xpose.msra.mxu0 0.0
      %607 = vmatprep.subr.mxu0 0.0
      %608 = vmatpush1.xpose.msra.mxu0 0.0
      %609 = vmatprep.subr.mxu0 0.0
      %610 = vmatpush1.xpose.msra.mxu0 0.0
      %611 = vmatprep.subr.mxu0 0.0
      %612 = vmatpush1.xpose.msra.mxu0 0.0
      %613 = vmatprep.subr.mxu0 0.0
      %614 = vmatpush1.xpose.msra.mxu0 0.0
      %615 = vmatprep.subr.mxu0 0.0
      %616 = vmatpush1.xpose.msra.mxu0 0.0
      %617 = vmatprep.subr.mxu0 0.0
      %618 = vmatpush1.xpose.msra.mxu0 0.0
      %619 = vmatprep.subr.mxu0 0.0
      %620 = vmatpush1.xpose.msra.mxu0 0.0
      %621 = vmatprep.subr.mxu0 0.0
      %622 = vmatpush1.xpose.msra.mxu0 0.0
      %623 = vmatprep.subr.mxu0 0.0
      %624 = vmatpush1.xpose.msra.mxu0 0.0
      %625 = vmatprep.subr.mxu0 0.0
      %626 = vmatpush1.xpose.msra.mxu0 0.0
      %627 = vmatprep.subr.mxu0 0.0
      %628 = vmatpush1.xpose.msra.mxu0 0.0
      %629 = vmatprep.subr.mxu0 0.0
      %630 = vmatpush1.xpose.msra.mxu0 0.0
      %631 = vmatprep.subr.mxu0 0.0
      %632 = vmatpush1.xpose.msra.mxu0 0.0
      %633 = vmatprep.subr.mxu0 0.0
      %634 = vmatpush1.xpose.msra.mxu0 0.0
      %635 = vmatprep.subr.mxu0 0.0
      %636 = vmatpush1.xpose.msra.mxu0 0.0
      %637 = vmatprep.subr.mxu0 0.0
      %638 = vmatpush1.xpose.msra.mxu0 0.0
      %639 = vmatprep.mubr.f32.mxu0 0.0
      %640 = vmatmul.mubr.f32.gmra.mrb[0].mxu0 %v571
      %v641 = vpop.f32.mrb[0].mxu0
      %v642 = vadd.f32 %v382, %v641
      %v643 = vpop.f32.mrb[0].mxu0
      %644 = vdwg.mxu0
      %s645 = scalar_lea.vmem [#allocation2], 8
      %v646 = vld [vmem:[%s645] sm:$0xff]
      %s647 = scalar_lea.vmem [#allocation3], 8
      %v648 = vld [vmem:[%s647] sm:$0xff]
      %v649 = vsel %vm384, %v642, -inf
      %650 = vmax.xlane.f32.xlu0 %v649
      %v651 = vpop.xlane.xlu0 %650
      %v652 = vmax.f32 %v646, %v651
      %v653 = vsub.f32 %v646, %v652
      %v654 = vmul.f32 %v653, 1.442695
      %v655 = vpow.pop %v654
      %657 = vset.pattern.permute.xlu0 0
      %658 = vperm.xlu0 %657, %v652
      %v659 = vpop.permute.xlu0 %658
      %v661 = vsub.f32 %v642, %v659
      %v662 = vmul.f32 %v661, 1.442695
      %v663 = vpow.pop %v662
      %v664 = vmul.f32 %v655, %v648
      %v665 = vsel %vm384, %v663, 0.0
      %666 = vadd.xlane.f32.xlu0 %v665
      %v667 = vpop.xlane.xlu0 %666
      %v668 = vadd.f32 %v664, %v667
      %670 = vrot.lane.b32.xlu0 %v376, 120
      %v671 = vpop.permute.xlu0 %670
      %v674 = vsel %vm384, %v663, 0
      %676 = vmatprep.subr.mxu0 0.0
      %677 = vmatpush1.msra.mxu0 %v671
      %678 = vmatprep.subr.mxu0 0.0
      %679 = vmatpush1.msra.mxu0 0.0
      %680 = vmatprep.subr.mxu0 0.0
      %681 = vmatpush1.msra.mxu0 0.0
      %682 = vmatprep.subr.mxu0 0.0
      %683 = vmatpush1.msra.mxu0 0.0
      %684 = vmatprep.subr.mxu0 0.0
      %685 = vmatpush1.msra.mxu0 0.0
      %686 = vmatprep.subr.mxu0 0.0
      %687 = vmatpush1.msra.mxu0 0.0
      %688 = vmatprep.subr.mxu0 0.0
      %689 = vmatpush1.msra.mxu0 0.0
      %690 = vmatprep.subr.mxu0 0.0
      %691 = vmatpush1.msra.mxu0 0.0
      %692 = vmatprep.subr.mxu0 0.0
      %693 = vmatpush1.msra.mxu0 0.0
      %694 = vmatprep.subr.mxu0 0.0
      %695 = vmatpush1.msra.mxu0 0.0
      %696 = vmatprep.subr.mxu0 0.0
      %697 = vmatpush1.msra.mxu0 0.0
      %698 = vmatprep.subr.mxu0 0.0
      %699 = vmatpush1.msra.mxu0 0.0
      %700 = vmatprep.subr.mxu0 0.0
      %701 = vmatpush1.msra.mxu0 0.0
      %702 = vmatprep.subr.mxu0 0.0
      %703 = vmatpush1.msra.mxu0 0.0
      %704 = vmatprep.subr.mxu0 0.0
      %705 = vmatpush1.msra.mxu0 0.0
      %706 = vmatprep.subr.mxu0 0.0
      %707 = vmatpush1.msra.mxu0 0.0
      %708 = vmatprep.subr.mxu0 0.0
      %709 = vmatpush1.msra.mxu0 0.0
      %710 = vmatprep.subr.mxu0 0.0
      %711 = vmatpush1.msra.mxu0 0.0
      %712 = vmatprep.subr.mxu0 0.0
      %713 = vmatpush1.msra.mxu0 0.0
      %714 = vmatprep.subr.mxu0 0.0
      %715 = vmatpush1.msra.mxu0 0.0
      %716 = vmatprep.subr.mxu0 0.0
      %717 = vmatpush1.msra.mxu0 0.0
      %718 = vmatprep.subr.mxu0 0.0
      %719 = vmatpush1.msra.mxu0 0.0
      %720 = vmatprep.subr.mxu0 0.0
      %721 = vmatpush1.msra.mxu0 0.0
      %722 = vmatprep.subr.mxu0 0.0
      %723 = vmatpush1.msra.mxu0 0.0
      %724 = vmatprep.subr.mxu0 0.0
      %725 = vmatpush1.msra.mxu0 0.0
      %726 = vmatprep.subr.mxu0 0.0
      %727 = vmatpush1.msra.mxu0 0.0
      %728 = vmatprep.subr.mxu0 0.0
      %729 = vmatpush1.msra.mxu0 0.0
      %730 = vmatprep.subr.mxu0 0.0
      %731 = vmatpush1.msra.mxu0 0.0
      %732 = vmatprep.subr.mxu0 0.0
      %733 = vmatpush1.msra.mxu0 0.0
      %734 = vmatprep.subr.mxu0 0.0
      %735 = vmatpush1.msra.mxu0 0.0
      %736 = vmatprep.subr.mxu0 0.0
      %737 = vmatpush1.msra.mxu0 0.0
      %738 = vmatprep.subr.mxu0 0.0
      %739 = vmatpush1.msra.mxu0 0.0
      %740 = vmatprep.mubr.f32.mxu0 0.0
      %741 = vmatmul.mubr.f32.gmra.mrb[0].mxu0 %v674
      %v742 = vpop.f32.mrb[0].mxu0
      %v743 = vadd.f32 0.0, %v742
      %v744 = vpop.f32.mrb[0].mxu0
      %745 = vdwg.mxu0
      %v746 = vld [vmem:[#allocation4] sm:$0xff]
      %748 = vset.pattern.permute.xlu0 0
      %749 = vperm.xlu0 %748, %v655
      %v750 = vpop.permute.xlu0 %749
      %v752 = vmul.f32 %v750, %v746
      %754 = vrot.lane.b32.xlu0 %v743, 8
      %v755 = vpop.permute.xlu0 %754
      %v757 = vadd.f32 %v752, %v755
      %vm758 = vcmask 130112
      %759 = vst.msk [vmem:[#allocation4] sm:$0xff] %vm758, %v757
      %760 = vst [vmem:[%s645] sm:$0xff] %v652
      %761 = vst [vmem:[%s647] sm:$0xff] %v668
      %762 = vrot.lane.b32.xlu0 %v374, 112
      %v763 = vpop.permute.xlu0 %762
      %764 = vrot.lane.b32.xlu0 %v375, 112
      %v765 = vpop.permute.xlu0 %764
      %v766 = vsel %vm384, %v763, 0
      %v768 = vsel %vm384, %v765, 0
      %770 = vmatprep.subr.mxu0 0.0
      %771 = vmatpush1.xpose.msra.mxu0 %v768
      %772 = vmatprep.subr.mxu0 0.0
      %773 = vmatpush1.xpose.msra.mxu0 0.0
      %774 = vmatprep.subr.mxu0 0.0
      %775 = vmatpush1.xpose.msra.mxu0 0.0
      %776 = vmatprep.subr.mxu0 0.0
      %777 = vmatpush1.xpose.msra.mxu0 0.0
      %778 = vmatprep.subr.mxu0 0.0
      %779 = vmatpush1.xpose.msra.mxu0 0.0
      %780 = vmatprep.subr.mxu0 0.0
      %781 = vmatpush1.xpose.msra.mxu0 0.0
      %782 = vmatprep.subr.mxu0 0.0
      %783 = vmatpush1.xpose.msra.mxu0 0.0
      %784 = vmatprep.subr.mxu0 0.0
      %785 = vmatpush1.xpose.msra.mxu0 0.0
      %786 = vmatprep.subr.mxu0 0.0
      %787 = vmatpush1.xpose.msra.mxu0 0.0
      %788 = vmatprep.subr.mxu0 0.0
      %789 = vmatpush1.xpose.msra.mxu0 0.0
      %790 = vmatprep.subr.mxu0 0.0
      %791 = vmatpush1.xpose.msra.mxu0 0.0
      %792 = vmatprep.subr.mxu0 0.0
      %793 = vmatpush1.xpose.msra.mxu0 0.0
      %794 = vmatprep.subr.mxu0 0.0
      %795 = vmatpush1.xpose.msra.mxu0 0.0
      %796 = vmatprep.subr.mxu0 0.0
      %797 = vmatpush1.xpose.msra.mxu0 0.0
      %798 = vmatprep.subr.mxu0 0.0
      %799 = vmatpush1.xpose.msra.mxu0 0.0
      %800 = vmatprep.subr.mxu0 0.0
      %801 = vmatpush1.xpose.msra.mxu0 0.0
      %802 = vmatprep.subr.mxu0 0.0
      %803 = vmatpush1.xpose.msra.mxu0 0.0
      %804 = vmatprep.subr.mxu0 0.0
      %805 = vmatpush1.xpose.msra.mxu0 0.0
      %806 = vmatprep.subr.mxu0 0.0
      %807 = vmatpush1.xpose.msra.mxu0 0.0
      %808 = vmatprep.subr.mxu0 0.0
      %809 = vmatpush1.xpose.msra.mxu0 0.0
      %810 = vmatprep.subr.mxu0 0.0
      %811 = vmatpush1.xpose.msra.mxu0 0.0
      %812 = vmatprep.subr.mxu0 0.0
      %813 = vmatpush1.xpose.msra.mxu0 0.0
      %814 = vmatprep.subr.mxu0 0.0
      %815 = vmatpush1.xpose.msra.mxu0 0.0
      %816 = vmatprep.subr.mxu0 0.0
      %817 = vmatpush1.xpose.msra.mxu0 0.0
      %818 = vmatprep.subr.mxu0 0.0
      %819 = vmatpush1.xpose.msra.mxu0 0.0
      %820 = vmatprep.subr.mxu0 0.0
      %821 = vmatpush1.xpose.msra.mxu0 0.0
      %822 = vmatprep.subr.mxu0 0.0
      %823 = vmatpush1.xpose.msra.mxu0 0.0
      %824 = vmatprep.subr.mxu0 0.0
      %825 = vmatpush1.xpose.msra.mxu0 0.0
      %826 = vmatprep.subr.mxu0 0.0
      %827 = vmatpush1.xpose.msra.mxu0 0.0
      %828 = vmatprep.subr.mxu0 0.0
      %829 = vmatpush1.xpose.msra.mxu0 0.0
      %830 = vmatprep.subr.mxu0 0.0
      %831 = vmatpush1.xpose.msra.mxu0 0.0
      %832 = vmatprep.subr.mxu0 0.0
      %833 = vmatpush1.xpose.msra.mxu0 0.0
      %834 = vmatprep.mubr.f32.mxu0 0.0
      %835 = vmatmul.mubr.f32.gmra.mrb[0].mxu0 %v766
      %v836 = vpop.f32.mrb[0].mxu0
      %v837 = vadd.f32 %v382, %v836
      %v838 = vpop.f32.mrb[0].mxu0
      %839 = vdwg.mxu0
      %s840 = scalar_lea.vmem [#allocation2], 16
      %v841 = vld [vmem:[%s840] sm:$0xff]
      %s842 = scalar_lea.vmem [#allocation3], 16
      %v843 = vld [vmem:[%s842] sm:$0xff]
      %v844 = vsel %vm384, %v837, -inf
      %845 = vmax.xlane.f32.xlu0 %v844
      %v846 = vpop.xlane.xlu0 %845
      %v847 = vmax.f32 %v841, %v846
      %v848 = vsub.f32 %v841, %v847
      %v849 = vmul.f32 %v848, 1.442695
      %v850 = vpow.pop %v849
      %852 = vset.pattern.permute.xlu0 0
      %853 = vperm.xlu0 %852, %v847
      %v854 = vpop.permute.xlu0 %853
      %v856 = vsub.f32 %v837, %v854
      %v857 = vmul.f32 %v856, 1.442695
      %v858 = vpow.pop %v857
      %v859 = vmul.f32 %v850, %v843
      %v860 = vsel %vm384, %v858, 0.0
      %861 = vadd.xlane.f32.xlu0 %v860
      %v862 = vpop.xlane.xlu0 %861
      %v863 = vadd.f32 %v859, %v862
      %864 = vrot.lane.b32.xlu0 %v376, 112
      %v865 = vpop.permute.xlu0 %864
      %v868 = vsel %vm384, %v858, 0
      %870 = vmatprep.subr.mxu0 0.0
      %871 = vmatpush1.msra.mxu0 %v865
      %872 = vmatprep.subr.mxu0 0.0
      %873 = vmatpush1.msra.mxu0 0.0
      %874 = vmatprep.subr.mxu0 0.0
      %875 = vmatpush1.msra.mxu0 0.0
      %876 = vmatprep.subr.mxu0 0.0
      %877 = vmatpush1.msra.mxu0 0.0
      %878 = vmatprep.subr.mxu0 0.0
      %879 = vmatpush1.msra.mxu0 0.0
      %880 = vmatprep.subr.mxu0 0.0
      %881 = vmatpush1.msra.mxu0 0.0
      %882 = vmatprep.subr.mxu0 0.0
      %883 = vmatpush1.msra.mxu0 0.0
      %884 = vmatprep.subr.mxu0 0.0
      %885 = vmatpush1.msra.mxu0 0.0
      %886 = vmatprep.subr.mxu0 0.0
      %887 = vmatpush1.msra.mxu0 0.0
      %888 = vmatprep.subr.mxu0 0.0
      %889 = vmatpush1.msra.mxu0 0.0
      %890 = vmatprep.subr.mxu0 0.0
      %891 = vmatpush1.msra.mxu0 0.0
      %892 = vmatprep.subr.mxu0 0.0
      %893 = vmatpush1.msra.mxu0 0.0
      %894 = vmatprep.subr.mxu0 0.0
      %895 = vmatpush1.msra.mxu0 0.0
      %896 = vmatprep.subr.mxu0 0.0
      %897 = vmatpush1.msra.mxu0 0.0
      %898 = vmatprep.subr.mxu0 0.0
      %899 = vmatpush1.msra.mxu0 0.0
      %900 = vmatprep.subr.mxu0 0.0
      %901 = vmatpush1.msra.mxu0 0.0
      %902 = vmatprep.subr.mxu0 0.0
      %903 = vmatpush1.msra.mxu0 0.0
      %904 = vmatprep.subr.mxu0 0.0
      %905 = vmatpush1.msra.mxu0 0.0
      %906 = vmatprep.subr.mxu0 0.0
      %907 = vmatpush1.msra.mxu0 0.0
      %908 = vmatprep.subr.mxu0 0.0
      %909 = vmatpush1.msra.mxu0 0.0
      %910 = vmatprep.subr.mxu0 0.0
      %911 = vmatpush1.msra.mxu0 0.0
      %912 = vmatprep.subr.mxu0 0.0
      %913 = vmatpush1.msra.mxu0 0.0
      %914 = vmatprep.subr.mxu0 0.0
      %915 = vmatpush1.msra.mxu0 0.0
      %916 = vmatprep.subr.mxu0 0.0
      %917 = vmatpush1.msra.mxu0 0.0
      %918 = vmatprep.subr.mxu0 0.0
      %919 = vmatpush1.msra.mxu0 0.0
      %920 = vmatprep.subr.mxu0 0.0
      %921 = vmatpush1.msra.mxu0 0.0
      %922 = vmatprep.subr.mxu0 0.0
      %923 = vmatpush1.msra.mxu0 0.0
      %924 = vmatprep.subr.mxu0 0.0
      %925 = vmatpush1.msra.mxu0 0.0
      %926 = vmatprep.subr.mxu0 0.0
      %927 = vmatpush1.msra.mxu0 0.0
      %928 = vmatprep.subr.mxu0 0.0
      %929 = vmatpush1.msra.mxu0 0.0
      %930 = vmatprep.subr.mxu0 0.0
      %931 = vmatpush1.msra.mxu0 0.0
      %932 = vmatprep.subr.mxu0 0.0
      %933 = vmatpush1.msra.mxu0 0.0
      %934 = vmatprep.mubr.f32.mxu0 0.0
      %935 = vmatmul.mubr.f32.gmra.mrb[0].mxu0 %v868
      %v936 = vpop.f32.mrb[0].mxu0
      %v937 = vadd.f32 0.0, %v936
      %v938 = vpop.f32.mrb[0].mxu0
      %939 = vdwg.mxu0
      %v940 = vld [vmem:[#allocation4] sm:$0xff]
      %942 = vset.pattern.permute.xlu0 0
      %943 = vperm.xlu0 %942, %v850
      %v944 = vpop.permute.xlu0 %943
      %v946 = vmul.f32 %v944, %v940
      %948 = vrot.lane.b32.xlu0 %v937, 16
      %v949 = vpop.permute.xlu0 %948
      %v951 = vadd.f32 %v946, %v949
      %vm952 = vcmask 195712
      %953 = vst.msk [vmem:[#allocation4] sm:$0xff] %vm952, %v951
      %954 = vst [vmem:[%s840] sm:$0xff] %v847
      %955 = vst [vmem:[%s842] sm:$0xff] %v863
      %956 = vrot.lane.b32.xlu0 %v374, 104
      %v957 = vpop.permute.xlu0 %956
      %958 = vrot.lane.b32.xlu0 %v375, 104
      %v959 = vpop.permute.xlu0 %958
      %v960 = vsel %vm384, %v957, 0
      %v962 = vsel %vm384, %v959, 0
      %964 = vmatprep.subr.mxu0 0.0
      %965 = vmatpush1.xpose.msra.mxu0 %v962
      %966 = vmatprep.subr.mxu0 0.0
      %967 = vmatpush1.xpose.msra.mxu0 0.0
      %968 = vmatprep.subr.mxu0 0.0
      %969 = vmatpush1.xpose.msra.mxu0 0.0
      %970 = vmatprep.subr.mxu0 0.0
      %971 = vmatpush1.xpose.msra.mxu0 0.0
      %972 = vmatprep.subr.mxu0 0.0
      %973 = vmatpush1.xpose.msra.mxu0 0.0
      %974 = vmatprep.subr.mxu0 0.0
      %975 = vmatpush1.xpose.msra.mxu0 0.0
      %976 = vmatprep.subr.mxu0 0.0
      %977 = vmatpush1.xpose.msra.mxu0 0.0
      %978 = vmatprep.subr.mxu0 0.0
      %979 = vmatpush1.xpose.msra.mxu0 0.0
      %980 = vmatprep.subr.mxu0 0.0
      %981 = vmatpush1.xpose.msra.mxu0 0.0
      %982 = vmatprep.subr.mxu0 0.0
      %983 = vmatpush1.xpose.msra.mxu0 0.0
      %984 = vmatprep.subr.mxu0 0.0
      %985 = vmatpush1.xpose.msra.mxu0 0.0
      %986 = vmatprep.subr.mxu0 0.0
      %987 = vmatpush1.xpose.msra.mxu0 0.0
      %988 = vmatprep.subr.mxu0 0.0
      %989 = vmatpush1.xpose.msra.mxu0 0.0
      %990 = vmatprep.subr.mxu0 0.0
      %991 = vmatpush1.xpose.msra.mxu0 0.0
      %992 = vmatprep.subr.mxu0 0.0
      %993 = vmatpush1.xpose.msra.mxu0 0.0
      %994 = vmatprep.subr.mxu0 0.0
      %995 = vmatpush1.xpose.msra.mxu0 0.0
      %996 = vmatprep.subr.mxu0 0.0
      %997 = vmatpush1.xpose.msra.mxu0 0.0
      %998 = vmatprep.subr.mxu0 0.0
      %999 = vmatpush1.xpose.msra.mxu0 0.0
      %1000 = vmatprep.subr.mxu0 0.0
      %1001 = vmatpush1.xpose.msra.mxu0 0.0
      %1002 = vmatprep.subr.mxu0 0.0
      %1003 = vmatpush1.xpose.msra.mxu0 0.0
      %1004 = vmatprep.subr.mxu0 0.0
      %1005 = vmatpush1.xpose.msra.mxu0 0.0
      %1006 = vmatprep.subr.mxu0 0.0
      %1007 = vmatpush1.xpose.msra.mxu0 0.0
      %1008 = vmatprep.subr.mxu0 0.0
      %1009 = vmatpush1.xpose.msra.mxu0 0.0
      %1010 = vmatprep.subr.mxu0 0.0
      %1011 = vmatpush1.xpose.msra.mxu0 0.0
      %1012 = vmatprep.subr.mxu0 0.0
      %1013 = vmatpush1.xpose.msra.mxu0 0.0
      %1014 = vmatprep.subr.mxu0 0.0
      %1015 = vmatpush1.xpose.msra.mxu0 0.0
      %1016 = vmatprep.subr.mxu0 0.0
      %1017 = vmatpush1.xpose.msra.mxu0 0.0
      %1018 = vmatprep.subr.mxu0 0.0
      %1019 = vmatpush1.xpose.msra.mxu0 0.0
      %1020 = vmatprep.subr.mxu0 0.0
      %1021 = vmatpush1.xpose.msra.mxu0 0.0
      %1022 = vmatprep.subr.mxu0 0.0
      %1023 = vmatpush1.xpose.msra.mxu0 0.0
      %1024 = vmatprep.subr.mxu0 0.0
      %1025 = vmatpush1.xpose.msra.mxu0 0.0
      %1026 = vmatprep.subr.mxu0 0.0
      %1027 = vmatpush1.xpose.msra.mxu0 0.0
      %1028 = vmatprep.mubr.f32.mxu0 0.0
      %1029 = vmatmul.mubr.f32.gmra.mrb[0].mxu0 %v960
      %v1030 = vpop.f32.mrb[0].mxu0
      %v1031 = vadd.f32 %v382, %v1030
      %v1032 = vpop.f32.mrb[0].mxu0
      %1033 = vdwg.mxu0
      %s1034 = scalar_lea.vmem [#allocation2], 24
      %v1035 = vld [vmem:[%s1034] sm:$0xff]
      %s1036 = scalar_lea.vmem [#allocation3], 24
      %v1037 = vld [vmem:[%s1036] sm:$0xff]
      %v1038 = vsel %vm384, %v1031, -inf
      %1039 = vmax.xlane.f32.xlu0 %v1038
      %v1040 = vpop.xlane.xlu0 %1039
      %v1041 = vmax.f32 %v1035, %v1040
      %v1042 = vsub.f32 %v1035, %v1041
      %v1043 = vmul.f32 %v1042, 1.442695
      %v1044 = vpow.pop %v1043
      %1046 = vset.pattern.permute.xlu0 0
      %1047 = vperm.xlu0 %1046, %v1041
      %v1048 = vpop.permute.xlu0 %1047
      %v1050 = vsub.f32 %v1031, %v1048
      %v1051 = vmul.f32 %v1050, 1.442695
      %v1052 = vpow.pop %v1051
      %v1053 = vmul.f32 %v1044, %v1037
      %v1054 = vsel %vm384, %v1052, 0.0
      %1055 = vadd.xlane.f32.xlu0 %v1054
      %v1056 = vpop.xlane.xlu0 %1055
      %v1057 = vadd.f32 %v1053, %v1056
      %1058 = vrot.lane.b32.xlu0 %v376, 104
      %v1059 = vpop.permute.xlu0 %1058
      %v1062 = vsel %vm384, %v1052, 0
      %1064 = vmatprep.subr.mxu0 0.0
      %1065 = vmatpush1.msra.mxu0 %v1059
      %1066 = vmatprep.subr.mxu0 0.0
      %1067 = vmatpush1.msra.mxu0 0.0
      %1068 = vmatprep.subr.mxu0 0.0
      %1069 = vmatpush1.msra.mxu0 0.0
      %1070 = vmatprep.subr.mxu0 0.0
      %1071 = vmatpush1.msra.mxu0 0.0
      %1072 = vmatprep.subr.mxu0 0.0
      %1073 = vmatpush1.msra.mxu0 0.0
      %1074 = vmatprep.subr.mxu0 0.0
      %1075 = vmatpush1.msra.mxu0 0.0
      %1076 = vmatprep.subr.mxu0 0.0
      %1077 = vmatpush1.msra.mxu0 0.0
      %1078 = vmatprep.subr.mxu0 0.0
      %1079 = vmatpush1.msra.mxu0 0.0
      %1080 = vmatprep.subr.mxu0 0.0
      %1081 = vmatpush1.msra.mxu0 0.0
      %1082 = vmatprep.subr.mxu0 0.0
      %1083 = vmatpush1.msra.mxu0 0.0
      %1084 = vmatprep.subr.mxu0 0.0
      %1085 = vmatpush1.msra.mxu0 0.0
      %1086 = vmatprep.subr.mxu0 0.0
      %1087 = vmatpush1.msra.mxu0 0.0
      %1088 = vmatprep.subr.mxu0 0.0
      %1089 = vmatpush1.msra.mxu0 0.0
      %1090 = vmatprep.subr.mxu0 0.0
      %1091 = vmatpush1.msra.mxu0 0.0
      %1092 = vmatprep.subr.mxu0 0.0
      %1093 = vmatpush1.msra.mxu0 0.0
      %1094 = vmatprep.subr.mxu0 0.0
      %1095 = vmatpush1.msra.mxu0 0.0
      %1096 = vmatprep.subr.mxu0 0.0
      %1097 = vmatpush1.msra.mxu0 0.0
      %1098 = vmatprep.subr.mxu0 0.0
      %1099 = vmatpush1.msra.mxu0 0.0
      %1100 = vmatprep.subr.mxu0 0.0
      %1101 = vmatpush1.msra.mxu0 0.0
      %1102 = vmatprep.subr.mxu0 0.0
      %1103 = vmatpush1.msra.mxu0 0.0
      %1104 = vmatprep.subr.mxu0 0.0
      %1105 = vmatpush1.msra.mxu0 0.0
      %1106 = vmatprep.subr.mxu0 0.0
      %1107 = vmatpush1.msra.mxu0 0.0
      %1108 = vmatprep.subr.mxu0 0.0
      %1109 = vmatpush1.msra.mxu0 0.0
      %1110 = vmatprep.subr.mxu0 0.0
      %1111 = vmatpush1.msra.mxu0 0.0
      %1112 = vmatprep.subr.mxu0 0.0
      %1113 = vmatpush1.msra.mxu0 0.0
      %1114 = vmatprep.subr.mxu0 0.0
      %1115 = vmatpush1.msra.mxu0 0.0
      %1116 = vmatprep.subr.mxu0 0.0
      %1117 = vmatpush1.msra.mxu0 0.0
      %1118 = vmatprep.subr.mxu0 0.0
      %1119 = vmatpush1.msra.mxu0 0.0
      %1120 = vmatprep.subr.mxu0 0.0
      %1121 = vmatpush1.msra.mxu0 0.0
      %1122 = vmatprep.subr.mxu0 0.0
      %1123 = vmatpush1.msra.mxu0 0.0
      %1124 = vmatprep.subr.mxu0 0.0
      %1125 = vmatpush1.msra.mxu0 0.0
      %1126 = vmatprep.subr.mxu0 0.0
      %1127 = vmatpush1.msra.mxu0 0.0
      %1128 = vmatprep.mubr.f32.mxu0 0.0
      %1129 = vmatmul.mubr.f32.gmra.mrb[0].mxu0 %v1062
      %v1130 = vpop.f32.mrb[0].mxu0
      %v1131 = vadd.f32 0.0, %v1130
      %v1132 = vpop.f32.mrb[0].mxu0
      %1133 = vdwg.mxu0
      %v1134 = vld [vmem:[#allocation4] sm:$0xff]
      %1136 = vset.pattern.permute.xlu0 0
      %1137 = vperm.xlu0 %1136, %v1044
      %v1138 = vpop.permute.xlu0 %1137
      %v1140 = vmul.f32 %v1138, %v1134
      %1142 = vrot.lane.b32.xlu0 %v1131, 24
      %v1143 = vpop.permute.xlu0 %1142
      %v1145 = vadd.f32 %v1140, %v1143
      %vm1146 = vcmask 261312
      %1147 = vst.msk [vmem:[#allocation4] sm:$0xff] %vm1146, %v1145
      %1148 = vst [vmem:[%s1034] sm:$0xff] %v1041
      %1149 = vst [vmem:[%s1036] sm:$0xff] %v1057
      // Predicated region
      $region41: #{_lambda_.4} parent=35 // pred_check
        %p1150 = pneg %p360
      $region42: #{_lambda_.4} parent=35 // pred_check_branch
        %1152 = sbr.rel (%p1150) target = $region44
      $region43: #{_lambda_.4} parent=35 // pred_region
        %v1153 = vld [vmem:[#allocation3] sm:$0xff]
        %v1154 = vrcp.pop %v1153
        %v1155 = vmul.f32 %v1153, %v1154
        %v1156 = vsub.f32 2.0, %v1155
        %v1157 = vmul.f32 %v1154, %v1156
        %v1158 = vmul.f32 %v1153, %v1157
        %v1159 = vsub.f32 2.0, %v1158
        %v1160 = vmul.f32 %v1157, %v1159
        %v1161 = vld [vmem:[#allocation4] sm:$0xff]
        %1163 = vset.pattern.permute.xlu0 0
        %1164 = vperm.xlu0 %1163, %v1160
        %v1165 = vpop.permute.xlu0 %1164
        %v1167 = vmul.f32 %v1161, %v1165
        %1168 = vst.msk [vmem:[#allocation4] sm:$0xff] %vm384, %v1167
        %v1169 = vld [vmem:[%s647] sm:$0xff]
        %v1170 = vrcp.pop %v1169
        %v1171 = vmul.f32 %v1169, %v1170
        %v1172 = vsub.f32 2.0, %v1171
        %v1173 = vmul.f32 %v1170, %v1172
        %v1174 = vmul.f32 %v1169, %v1173
        %v1175 = vsub.f32 2.0, %v1174
        %v1176 = vmul.f32 %v1173, %v1175
        %v1177 = vld [vmem:[#allocation4] sm:$0xff]
        %1179 = vset.pattern.permute.xlu0 0
        %1180 = vperm.xlu0 %1179, %v1176
        %v1181 = vpop.permute.xlu0 %1180
        %v1183 = vmul.f32 %v1177, %v1181
        %1184 = vst.msk [vmem:[#allocation4] sm:$0xff] %vm758, %v1183
        %v1185 = vld [vmem:[%s842] sm:$0xff]
        %v1186 = vrcp.pop %v1185
        %v1187 = vmul.f32 %v1185, %v1186
        %v1188 = vsub.f32 2.0, %v1187
        %v1189 = vmul.f32 %v1186, %v1188
        %v1190 = vmul.f32 %v1185, %v1189
        %v1191 = vsub.f32 2.0, %v1190
        %v1192 = vmul.f32 %v1189, %v1191
        %v1193 = vld [vmem:[#allocation4] sm:$0xff]
        %1195 = vset.pattern.permute.xlu0 0
        %1196 = vperm.xlu0 %1195, %v1192
        %v1197 = vpop.permute.xlu0 %1196
        %v1199 = vmul.f32 %v1193, %v1197
        %1200 = vst.msk [vmem:[#allocation4] sm:$0xff] %vm952, %v1199
        %v1201 = vld [vmem:[%s1036] sm:$0xff]
        %v1202 = vrcp.pop %v1201
        %v1203 = vmul.f32 %v1201, %v1202
        %v1204 = vsub.f32 2.0, %v1203
        %v1205 = vmul.f32 %v1202, %v1204
        %v1206 = vmul.f32 %v1201, %v1205
        %v1207 = vsub.f32 2.0, %v1206
        %v1208 = vmul.f32 %v1205, %v1207
        %v1209 = vld [vmem:[#allocation4] sm:$0xff]
        %1211 = vset.pattern.permute.xlu0 0
        %1212 = vperm.xlu0 %1211, %v1208
        %v1213 = vpop.permute.xlu0 %1212
        %v1215 = vmul.f32 %v1209, %v1213
        %1216 = vst.msk [vmem:[#allocation4] sm:$0xff] %vm1146, %v1215
        %v1217 = vld [vmem:[#allocation4] sm:$0xff]
        %vm1218 = vcmask 261120
        %1219 = vst.msk [vmem:[%s359] sm:$0xff] %vm1218, %v1217
      $region44: #{_lambda_.4} parent=35 // pred_fallthru
        _
      %p1220 = scmp.lt.s32.totalorder %s21, 1
      %s1221 = scalar_select %p1220, %s21, 1
      %p1222 = scmp.lt.s32.totalorder %s23, 0
      %s1223 = scalar_select %p1222, %s23, 0
      %p1224 = scmp.lt.s32.totalorder %s22, 0
      %s1225 = scalar_select %p1224, %s22, 0
      %s1226 = sadd.s32 %s1225, %s1223
      %s1227 = sadd.s32 %s1226, %s1221
      %s1228 = smul.addr %s1227, 8
      %s1229 = scalar_lea.vmem %s4, %s1228
      // Predicated region
      $region45: #{_lambda_.4} parent=35 // pred_check
        %p1230 = pneg %p181
      $region46: #{_lambda_.4} parent=35 // pred_check_branch
        %1232 = sbr.rel (%p1230) target = $region48
      $region47: #{_lambda_.4} parent=35 // pred_region
        _
      $region48: #{_lambda_.4} parent=35 // pred_fallthru
        _
    $region36: #{_lambda_.4} parent=5 // pred_fallthru
      _
    %p1233 = scmp.le.s32.totalorder 2, %s10
    // Predicated region
    $region49: #{_lambda_.4} parent=5 // pred_check
      %p1234 = pneg %p1233
    $region50: #{_lambda_.4} parent=5 // pred_check_branch
      %1236 = sbr.rel (%p1234) target = $region52
    $region51: #{_lambda_.4} parent=5 // pred_region
      %s1237 = ssub.s32 %s10, 2
      // Predicated region
      $region53: #{_lambda_.4} parent=51 // pred_check
        %p1238 = pneg %p187
      $region54: #{_lambda_.4} parent=51 // pred_check_branch
        %1240 = sbr.rel (%p1238) target = $region56
      $region55: #{_lambda_.4} parent=51 // pred_region
        %p1241 = scmp.lt.s32.totalorder %s25, 1
        %s1242 = scalar_select %p1241, %s25, 1
        %p1243 = scmp.lt.s32.totalorder %s27, 0
        %s1244 = scalar_select %p1243, %s27, 0
        %p1245 = scmp.lt.s32.totalorder %s26, 0
        %s1246 = scalar_select %p1245, %s26, 0
        %s1247 = sadd.s32 %s1246, %s1244
        %s1248 = sadd.s32 %s1247, %s1242
        %s1249 = smul.addr %s1248, 8
        %s1250 = scalar_lea.vmem %s4, %s1249
      $region56: #{_lambda_.4} parent=51 // pred_fallthru
        _
    $region52: #{_lambda_.4} parent=5 // pred_fallthru
      _
  $region6: #{_lambda_.4} parent=0 // loop_footer
    %s14 = sadd.s32 1, %s10
  $region7: #{_lambda_.4} parent=0 // loop_footer_branch
    %9 = sbr.rel target = $region3
  $region8: #{_lambda_.4} parent=0 // loop_exit
    _

</llo_original>
